<compile_context>
chip_gen: v6e
topology: v6e:2x2x1
jax: 0.10.0
libtpu: 0.0.40
codegen_flags: <defaults>
</compile_context>

<pallas_src>
import functools

import jax
import jax.numpy as jnp
from jax import lax
from jax.experimental import pallas as pl
from jax.experimental.pallas import tpu as pltpu

HIDDEN = 128
INPUT = 128
GATES = 4 * HIDDEN  # 512, PyTorch gate order: i, f, g, o


def fused_lstm_kernel(x_ref, wih_ref, whh_ref, b_ref, out_ref,
                      gx_ref, h_ref, c_ref, *, t_chunk, seq_len):
    """One grid point = (batch block, time chunk).

    Step A: chunk input projection (one big MXU matmul) into VMEM scratch.
    Step B: serial h/c recurrence over the chunk with h/c carried in vregs;
            h/c persist across chunks in VMEM scratch, output stays resident.
    """
    chunk = pl.program_id(1)

    @pl.when(chunk == 0)
    def _init():
        h_ref[...] = jnp.zeros_like(h_ref)
        c_ref[...] = jnp.zeros_like(c_ref)

    # ---- Step A: gates_x = x @ W_ih^T + (b_ih + b_hh), fused (no HBM round trip) ----
    tc, bp, f = x_ref.shape
    x2 = x_ref[...].reshape(tc * bp, f)                        # leading-dim flatten: free
    gx = (
        jnp.dot(x2, wih_ref[...], preferred_element_type=jnp.float32)
        + b_ref[...]                                           # (1, 512) broadcast
    )
    gx_ref[...] = gx.reshape(tc, bp, GATES)

    # ---- Step B: serial recurrence; only W_hh^T remains on the critical path ----
    t0 = chunk * t_chunk
    needs_mask = (seq_len % t_chunk) != 0  # static: only last-chunk padding needs it

    def step(t, carry):
        h, c = carry
        g = gx_ref[t] + jnp.dot(h, whh_ref[...], preferred_element_type=jnp.float32)
        # i and f occupy adjacent lane columns -> one fused sigmoid over [0:2H].
        if_g = jax.nn.sigmoid(g[:, 0:2 * HIDDEN])
        i_g = if_g[:, 0:HIDDEN]
        f_g = if_g[:, HIDDEN:2 * HIDDEN]
        g_g = jnp.tanh(g[:, 2 * HIDDEN:3 * HIDDEN])
        o_g = jax.nn.sigmoid(g[:, 3 * HIDDEN:4 * HIDDEN])
        c_new = f_g * c + i_g * g_g
        h_new = o_g * jnp.tanh(c_new)
        if needs_mask:
            valid = (t0 + t) < seq_len
            h_new = jnp.where(valid, h_new, h)
            c_new = jnp.where(valid, c_new, c)
        return h_new, c_new

    unroll_amt = True if t_chunk <= 16 else 8
    h, c = lax.fori_loop(0, t_chunk, step, (h_ref[...], c_ref[...]), unroll=unroll_amt)

    h_ref[...] = h
    c_ref[...] = c
    out_ref[...] = h.astype(out_ref.dtype)  # resident output; HBM writeback once per batch block


def speech_encoder_forward(x, w_ih, w_hh, b_ih, b_hh, *, t_chunk=128, batch_block=None):
    """x: (B, T, 128) float32.  Returns h_T: (B, 128) == out[:, -1, :]."""
    B, T, F = x.shape
    assert F == INPUT

    B_pad = ((B + 7) // 8) * 8                 # full 8-sublane tiles

    # Batch blocking: default one block.  On v7x with B_pad >= 16, pass
    # batch_block=B_pad//2 to shard the serial recurrence across both TensorCores
    # via the leading "parallel" grid axis.
    if batch_block is None:
        batch_block = B_pad
    batch_block = max(8, ((batch_block + 7) // 8) * 8)
    batch_block = min(batch_block, B_pad)
    if B_pad % batch_block != 0:
        batch_block = B_pad
    n_bblocks = B_pad // batch_block

    # VMEM sizing rule (v7x: 64 MiB physical / ~32 MiB scoped default):
    # resident gates scratch is t_chunk * batch_block * 2 KiB; cap it at ~8 MiB and
    # shrink t_chunk as the batch block grows.
    max_tc = max(8, (8 * 1024 * 1024) // (batch_block * GATES * 4))
    t_chunk = max(1, min(t_chunk, T, max_tc))
    n_chunks = (T + t_chunk - 1) // t_chunk
    T_pad = n_chunks * t_chunk

    wih_t = w_ih.T                              # (128, 512)
    whh_t = w_hh.T                              # (128, 512)
    bias = (b_ih + b_hh).reshape(1, GATES)      # (1, 512)

    # Time-major + padded layout so the recurrence reads one contiguous
    # (batch_block, 512) slab per step.  Single cheap XLA relayout, off the serial path.
    x_tm = jnp.transpose(x, (1, 0, 2))          # (T, B, 128)
    if T_pad != T or B_pad != B:
        x_tm = jnp.pad(x_tm, ((0, T_pad - T), (0, B_pad - B), (0, 0)))

    out = pl.pallas_call(
        functools.partial(fused_lstm_kernel, t_chunk=t_chunk, seq_len=T),
        out_shape=jax.ShapeDtypeStruct((B_pad, HIDDEN), jnp.float32),
        grid_spec=pltpu.PrefetchScalarGridSpec(
            num_scalar_prefetch=0,
            grid=(n_bblocks, n_chunks),
            in_specs=[
                pl.BlockSpec((t_chunk, batch_block, INPUT), lambda b, c: (c, b, 0)),
                pl.BlockSpec((INPUT, GATES), lambda b, c: (0, 0)),
                pl.BlockSpec((HIDDEN, GATES), lambda b, c: (0, 0)),
                pl.BlockSpec((1, GATES), lambda b, c: (0, 0)),
            ],
            out_specs=pl.BlockSpec((batch_block, HIDDEN), lambda b, c: (b, 0)),
            scratch_shapes=[
                pltpu.VMEM((t_chunk, batch_block, GATES), jnp.float32),  # gates_x (fused)
                pltpu.VMEM((batch_block, HIDDEN), jnp.float32),          # h state
                pltpu.VMEM((batch_block, HIDDEN), jnp.float32),          # c state
            ],
        ),
        compiler_params=pltpu.CompilerParams(
            # batch blocks independent; time recurrence sequential
            dimension_semantics=("parallel", "arbitrary"),
        ),
    )(x_tm, wih_t, whh_t, bias)

    return out[:B]


def lstm_reference(x, w_ih, w_hh, b_ih, b_hh):
    """Pure-JAX reference matching torch.nn.LSTM gate order (i, f, g, o)."""
    B = x.shape[0]
    h0 = jnp.zeros((B, HIDDEN), jnp.float32)
    c0 = jnp.zeros((B, HIDDEN), jnp.float32)

    def step(carry, x_t):
        h, c = carry
        gates = x_t @ w_ih.T + h @ w_hh.T + b_ih + b_hh
        i, f, g, o = jnp.split(gates, 4, axis=-1)
        i, f, o = jax.nn.sigmoid(i), jax.nn.sigmoid(f), jax.nn.sigmoid(o)
        g = jnp.tanh(g)
        c_new = f * c + i * g
        h_new = o * jnp.tanh(c_new)
        return (h_new, c_new), h_new

    (h_T, _), _ = lax.scan(step, (h0, c0), jnp.transpose(x, (1, 0, 2)))
    return h_T


if __name__ == "__main__":
    key = jax.random.PRNGKey(0)
    kx, k1, k2, k3, k4 = jax.random.split(key, 5)

    B, T = 2, 8
    x = jax.random.normal(kx, (B, T, INPUT), dtype=jnp.float32)

    # PyTorch LSTM parameter shapes:
    #   weight_ih_l0: (4*H, input_size), weight_hh_l0: (4*H, H),
    #   bias_ih_l0: (4*H,), bias_hh_l0: (4*H,)
    bound = 1.0 / jnp.sqrt(jnp.float32(HIDDEN))
    w_ih = jax.random.uniform(k1, (4 * HIDDEN, INPUT), jnp.float32, -bound, bound)
    w_hh = jax.random.uniform(k2, (4 * HIDDEN, HIDDEN), jnp.float32, -bound, bound)
    b_ih = jax.random.uniform(k3, (4 * HIDDEN,), jnp.float32, -bound, bound)
    b_hh = jax.random.uniform(k4, (4 * HIDDEN,), jnp.float32, -bound, bound)

    out = jax.block_until_ready(speech_encoder_forward(x, w_ih, w_hh, b_ih, b_hh))
    ref = jax.block_until_ready(lstm_reference(x, w_ih, w_hh, b_ih, b_hh))

    assert out.shape == (B, HIDDEN)
    assert jnp.allclose(out, ref, atol=1e-5, rtol=1e-5), "mismatch vs reference"

    print("KERNEL_OK")
</pallas_src>

<mosaic_0001>
module attributes {stable_mosaic.version = 11 : i64} {
  func.func @fused_lstm_kernel(%arg0: i32, %arg1: i32, %arg2: memref<8x8x128xf32, #tpu.memory_space<vmem>>, %arg3: memref<128x512xf32, #tpu.memory_space<vmem>>, %arg4: memref<128x512xf32, #tpu.memory_space<vmem>>, %arg5: memref<1x512xf32, #tpu.memory_space<vmem>>, %arg6: memref<8x128xf32, #tpu.memory_space<vmem>>, %arg7: memref<8x8x512xf32, #tpu.memory_space<vmem>>, %arg8: memref<8x128xf32, #tpu.memory_space<vmem>>, %arg9: memref<8x128xf32, #tpu.memory_space<vmem>>) attributes {dimension_semantics = [#tpu.dimension_semantics<parallel>, #tpu.dimension_semantics<arbitrary>], iteration_bounds = array<i64: 1, 1>, scalar_prefetch = 0 : i64, scratch_operands = 3 : i64, tpu.core_type = #tpu.core_type<tc>, window_params = [{transform_indices = @transform_0, window_bounds = array<i64: 8, 8, 128>}, {pipeline_mode = #tpu.pipeline_mode<synchronous>, transform_indices = @transform_1, window_bounds = array<i64: 128, 512>}, {pipeline_mode = #tpu.pipeline_mode<synchronous>, transform_indices = @transform_2, window_bounds = array<i64: 128, 512>}, {pipeline_mode = #tpu.pipeline_mode<synchronous>, transform_indices = @transform_3, window_bounds = array<i64: 1, 512>}, {transform_indices = @transform_4, window_bounds = array<i64: 8, 128>}]} {
    %c0_i32 = arith.constant 0 : i32
    %0 = arith.cmpi eq, %arg1, %c0_i32 : i32
    %1 = arith.extui %0 : i1 to i32
    %c0_i32_0 = arith.constant 0 : i32
    %2 = arith.cmpi ne, %1, %c0_i32_0 : i32
    scf.if %2 {
      %cst_77 = arith.constant 0.000000e+00 : f32
      %233 = vector.broadcast %cst_77 : f32 to vector<8x128xf32>
      %c0_78 = arith.constant 0 : index
      %c0_79 = arith.constant 0 : index
      %234 = vector.load %arg8[%c0_78, %c0_79] : memref<8x128xf32, #tpu.memory_space<vmem>>, vector<8x128xf32>
      tpu.vector_store %arg8[%c0_78, %c0_79], %233 {strides = array<i32>} : memref<8x128xf32, #tpu.memory_space<vmem>>, vector<8x128xf32>,
      %cst_80 = arith.constant 0.000000e+00 : f32
      %235 = vector.broadcast %cst_80 : f32 to vector<8x128xf32>
      %c0_81 = arith.constant 0 : index
      %c0_82 = arith.constant 0 : index
      %236 = vector.load %arg9[%c0_81, %c0_82] : memref<8x128xf32, #tpu.memory_space<vmem>>, vector<8x128xf32>
      tpu.vector_store %arg9[%c0_81, %c0_82], %235 {strides = array<i32>} : memref<8x128xf32, #tpu.memory_space<vmem>>, vector<8x128xf32>,
    } else {
    }
    %c0 = arith.constant 0 : index
    %c0_1 = arith.constant 0 : index
    %c0_2 = arith.constant 0 : index
    %3 = vector.load %arg2[%c0, %c0_1, %c0_2] : memref<8x8x128xf32, #tpu.memory_space<vmem>>, vector<8x8x128xf32>
    %4 = vector.shape_cast %3 : vector<8x8x128xf32> to vector<64x128xf32>
    %c0_3 = arith.constant 0 : index
    %c0_4 = arith.constant 0 : index
    %5 = vector.load %arg3[%c0_3, %c0_4] : memref<128x512xf32, #tpu.memory_space<vmem>>, vector<128x512xf32>
    %cst = arith.constant dense<0.000000e+00> : vector<64x512xf32>
    %6 = tpu.matmul %4, %5, %cst {dimension_numbers = #tpu.dot_dimension_numbers<[1], [0], [0], [1], [0, 0, 1, 1], [], []>} : vector<64x128xf32>, vector<128x512xf32>, vector<64x512xf32> -> vector<64x512xf32>
    %c0_5 = arith.constant 0 : index
    %c0_6 = arith.constant 0 : index
    %7 = vector.load %arg5[%c0_5, %c0_6] : memref<1x512xf32, #tpu.memory_space<vmem>>, vector<1x512xf32>
    %8 = vector.broadcast %7 : vector<1x512xf32> to vector<64x512xf32>
    %9 = arith.addf %6, %8 : vector<64x512xf32>
    %10 = vector.shape_cast %9 : vector<64x512xf32> to vector<8x8x512xf32>
    %c0_7 = arith.constant 0 : index
    %c0_8 = arith.constant 0 : index
    %c0_9 = arith.constant 0 : index
    %11 = vector.load %arg7[%c0_7, %c0_8, %c0_9] : memref<8x8x512xf32, #tpu.memory_space<vmem>>, vector<8x8x512xf32>
    tpu.vector_store %arg7[%c0_7, %c0_8, %c0_9], %10 {strides = array<i32>} : memref<8x8x512xf32, #tpu.memory_space<vmem>>, vector<8x8x512xf32>,
    %c0_10 = arith.constant 0 : index
    %c0_11 = arith.constant 0 : index
    %12 = vector.load %arg8[%c0_10, %c0_11] : memref<8x128xf32, #tpu.memory_space<vmem>>, vector<8x128xf32>
    %c0_12 = arith.constant 0 : index
    %c0_13 = arith.constant 0 : index
    %13 = vector.load %arg9[%c0_12, %c0_13] : memref<8x128xf32, #tpu.memory_space<vmem>>, vector<8x128xf32>
    %c0_i32_14 = arith.constant 0 : i32
    %14 = arith.index_cast %c0_i32_14 : i32 to index
    %c0_15 = arith.constant 0 : index
    %c0_16 = arith.constant 0 : index
    %15 = vector.load %arg7[%14, %c0_15, %c0_16] : memref<8x8x512xf32, #tpu.memory_space<vmem>>, vector<1x8x512xf32>
    %16 = vector.shape_cast %15 : vector<1x8x512xf32> to vector<8x512xf32>
    %c0_17 = arith.constant 0 : index
    %c0_18 = arith.constant 0 : index
    %17 = vector.load %arg4[%c0_17, %c0_18] : memref<128x512xf32, #tpu.memory_space<vmem>>, vector<128x512xf32>
    %cst_19 = arith.constant dense<0.000000e+00> : vector<8x512xf32>
    %18 = tpu.matmul %12, %17, %cst_19 {dimension_numbers = #tpu.dot_dimension_numbers<[1], [0], [0], [1], [0, 0, 1, 1], [], []>} : vector<8x128xf32>, vector<128x512xf32>, vector<8x512xf32> -> vector<8x512xf32>
    %19 = arith.addf %16, %18 : vector<8x512xf32>
    %20 = vector.extract_strided_slice %19 {offsets = [0, 0], sizes = [8, 256], strides = [1, 1]} : vector<8x512xf32> to vector<8x256xf32>
    %21 = arith.negf %20 : vector<8x256xf32>
    %22 = math.exp %21 : vector<8x256xf32>
    %cst_20 = arith.constant 1.000000e+00 : f32
    %23 = vector.broadcast %cst_20 : f32 to vector<8x256xf32>
    %24 = arith.addf %23, %22 : vector<8x256xf32>
    %25 = arith.divf %23, %24 : vector<8x256xf32>
    %26 = vector.extract_strided_slice %25 {offsets = [0, 0], sizes = [8, 128], strides = [1, 1]} : vector<8x256xf32> to vector<8x128xf32>
    %27 = vector.extract_strided_slice %25 {offsets = [0, 128], sizes = [8, 128], strides = [1, 1]} : vector<8x256xf32> to vector<8x128xf32>
    %28 = vector.extract_strided_slice %19 {offsets = [0, 256], sizes = [8, 128], strides = [1, 1]} : vector<8x512xf32> to vector<8x128xf32>
    %29 = math.tanh %28 : vector<8x128xf32>
    %30 = vector.extract_strided_slice %19 {offsets = [0, 384], sizes = [8, 128], strides = [1, 1]} : vector<8x512xf32> to vector<8x128xf32>
    %31 = arith.negf %30 : vector<8x128xf32>
    %32 = math.exp %31 : vector<8x128xf32>
    %cst_21 = arith.constant 1.000000e+00 : f32
    %33 = vector.broadcast %cst_21 : f32 to vector<8x128xf32>
    %34 = arith.addf %33, %32 : vector<8x128xf32>
    %35 = arith.divf %33, %34 : vector<8x128xf32>
    %36 = arith.mulf %27, %13 : vector<8x128xf32>
    %37 = arith.mulf %26, %29 : vector<8x128xf32>
    %38 = arith.addf %36, %37 : vector<8x128xf32>
    %39 = math.tanh %38 : vector<8x128xf32>
    %40 = arith.mulf %35, %39 : vector<8x128xf32>
    %c1_i32 = arith.constant 1 : i32
    %41 = arith.index_cast %c1_i32 : i32 to index
    %c0_22 = arith.constant 0 : index
    %c0_23 = arith.constant 0 : index
    %42 = vector.load %arg7[%41, %c0_22, %c0_23] : memref<8x8x512xf32, #tpu.memory_space<vmem>>, vector<1x8x512xf32>
    %43 = vector.shape_cast %42 : vector<1x8x512xf32> to vector<8x512xf32>
    %c0_24 = arith.constant 0 : index
    %c0_25 = arith.constant 0 : index
    %44 = vector.load %arg4[%c0_24, %c0_25] : memref<128x512xf32, #tpu.memory_space<vmem>>, vector<128x512xf32>
    %cst_26 = arith.constant dense<0.000000e+00> : vector<8x512xf32>
    %45 = tpu.matmul %40, %44, %cst_26 {dimension_numbers = #tpu.dot_dimension_numbers<[1], [0], [0], [1], [0, 0, 1, 1], [], []>} : vector<8x128xf32>, vector<128x512xf32>, vector<8x512xf32> -> vector<8x512xf32>
    %46 = arith.addf %43, %45 : vector<8x512xf32>
    %47 = vector.extract_strided_slice %46 {offsets = [0, 0], sizes = [8, 256], strides = [1, 1]} : vector<8x512xf32> to vector<8x256xf32>
    %48 = arith.negf %47 : vector<8x256xf32>
    %49 = math.exp %48 : vector<8x256xf32>
    %cst_27 = arith.constant 1.000000e+00 : f32
    %50 = vector.broadcast %cst_27 : f32 to vector<8x256xf32>
    %51 = arith.addf %50, %49 : vector<8x256xf32>
    %52 = arith.divf %50, %51 : vector<8x256xf32>
    %53 = vector.extract_strided_slice %52 {offsets = [0, 0], sizes = [8, 128], strides = [1, 1]} : vector<8x256xf32> to vector<8x128xf32>
    %54 = vector.extract_strided_slice %52 {offsets = [0, 128], sizes = [8, 128], strides = [1, 1]} : vector<8x256xf32> to vector<8x128xf32>
    %55 = vector.extract_strided_slice %46 {offsets = [0, 256], sizes = [8, 128], strides = [1, 1]} : vector<8x512xf32> to vector<8x128xf32>
    %56 = math.tanh %55 : vector<8x128xf32>
    %57 = vector.extract_strided_slice %46 {offsets = [0, 384], sizes = [8, 128], strides = [1, 1]} : vector<8x512xf32> to vector<8x128xf32>
    %58 = arith.negf %57 : vector<8x128xf32>
    %59 = math.exp %58 : vector<8x128xf32>
    %cst_28 = arith.constant 1.000000e+00 : f32
    %60 = vector.broadcast %cst_28 : f32 to vector<8x128xf32>
    %61 = arith.addf %60, %59 : vector<8x128xf32>
    %62 = arith.divf %60, %61 : vector<8x128xf32>
    %63 = arith.mulf %54, %38 : vector<8x128xf32>
    %64 = arith.mulf %53, %56 : vector<8x128xf32>
    %65 = arith.addf %63, %64 : vector<8x128xf32>
    %66 = math.tanh %65 : vector<8x128xf32>
    %67 = arith.mulf %62, %66 : vector<8x128xf32>
    %c2_i32 = arith.constant 2 : i32
    %68 = arith.index_cast %c2_i32 : i32 to index
    %c0_29 = arith.constant 0 : index
    %c0_30 = arith.constant 0 : index
    %69 = vector.load %arg7[%68, %c0_29, %c0_30] : memref<8x8x512xf32, #tpu.memory_space<vmem>>, vector<1x8x512xf32>
    %70 = vector.shape_cast %69 : vector<1x8x512xf32> to vector<8x512xf32>
    %c0_31 = arith.constant 0 : index
    %c0_32 = arith.constant 0 : index
    %71 = vector.load %arg4[%c0_31, %c0_32] : memref<128x512xf32, #tpu.memory_space<vmem>>, vector<128x512xf32>
    %cst_33 = arith.constant dense<0.000000e+00> : vector<8x512xf32>
    %72 = tpu.matmul %67, %71, %cst_33 {dimension_numbers = #tpu.dot_dimension_numbers<[1], [0], [0], [1], [0, 0, 1, 1], [], []>} : vector<8x128xf32>, vector<128x512xf32>, vector<8x512xf32> -> vector<8x512xf32>
    %73 = arith.addf %70, %72 : vector<8x512xf32>
    %74 = vector.extract_strided_slice %73 {offsets = [0, 0], sizes = [8, 256], strides = [1, 1]} : vector<8x512xf32> to vector<8x256xf32>
    %75 = arith.negf %74 : vector<8x256xf32>
    %76 = math.exp %75 : vector<8x256xf32>
    %cst_34 = arith.constant 1.000000e+00 : f32
    %77 = vector.broadcast %cst_34 : f32 to vector<8x256xf32>
    %78 = arith.addf %77, %76 : vector<8x256xf32>
    %79 = arith.divf %77, %78 : vector<8x256xf32>
    %80 = vector.extract_strided_slice %79 {offsets = [0, 0], sizes = [8, 128], strides = [1, 1]} : vector<8x256xf32> to vector<8x128xf32>
    %81 = vector.extract_strided_slice %79 {offsets = [0, 128], sizes = [8, 128], strides = [1, 1]} : vector<8x256xf32> to vector<8x128xf32>
    %82 = vector.extract_strided_slice %73 {offsets = [0, 256], sizes = [8, 128], strides = [1, 1]} : vector<8x512xf32> to vector<8x128xf32>
    %83 = math.tanh %82 : vector<8x128xf32>
    %84 = vector.extract_strided_slice %73 {offsets = [0, 384], sizes = [8, 128], strides = [1, 1]} : vector<8x512xf32> to vector<8x128xf32>
    %85 = arith.negf %84 : vector<8x128xf32>
    %86 = math.exp %85 : vector<8x128xf32>
    %cst_35 = arith.constant 1.000000e+00 : f32
    %87 = vector.broadcast %cst_35 : f32 to vector<8x128xf32>
    %88 = arith.addf %87, %86 : vector<8x128xf32>
    %89 = arith.divf %87, %88 : vector<8x128xf32>
    %90 = arith.mulf %81, %65 : vector<8x128xf32>
    %91 = arith.mulf %80, %83 : vector<8x128xf32>
    %92 = arith.addf %90, %91 : vector<8x128xf32>
    %93 = math.tanh %92 : vector<8x128xf32>
    %94 = arith.mulf %89, %93 : vector<8x128xf32>
    %c3_i32 = arith.constant 3 : i32
    %95 = arith.index_cast %c3_i32 : i32 to index
    %c0_36 = arith.constant 0 : index
    %c0_37 = arith.constant 0 : index
    %96 = vector.load %arg7[%95, %c0_36, %c0_37] : memref<8x8x512xf32, #tpu.memory_space<vmem>>, vector<1x8x512xf32>
    %97 = vector.shape_cast %96 : vector<1x8x512xf32> to vector<8x512xf32>
    %c0_38 = arith.constant 0 : index
    %c0_39 = arith.constant 0 : index
    %98 = vector.load %arg4[%c0_38, %c0_39] : memref<128x512xf32, #tpu.memory_space<vmem>>, vector<128x512xf32>
    %cst_40 = arith.constant dense<0.000000e+00> : vector<8x512xf32>
    %99 = tpu.matmul %94, %98, %cst_40 {dimension_numbers = #tpu.dot_dimension_numbers<[1], [0], [0], [1], [0, 0, 1, 1], [], []>} : vector<8x128xf32>, vector<128x512xf32>, vector<8x512xf32> -> vector<8x512xf32>
    %100 = arith.addf %97, %99 : vector<8x512xf32>
    %101 = vector.extract_strided_slice %100 {offsets = [0, 0], sizes = [8, 256], strides = [1, 1]} : vector<8x512xf32> to vector<8x256xf32>
    %102 = arith.negf %101 : vector<8x256xf32>
    %103 = math.exp %102 : vector<8x256xf32>
    %cst_41 = arith.constant 1.000000e+00 : f32
    %104 = vector.broadcast %cst_41 : f32 to vector<8x256xf32>
    %105 = arith.addf %104, %103 : vector<8x256xf32>
    %106 = arith.divf %104, %105 : vector<8x256xf32>
    %107 = vector.extract_strided_slice %106 {offsets = [0, 0], sizes = [8, 128], strides = [1, 1]} : vector<8x256xf32> to vector<8x128xf32>
    %108 = vector.extract_strided_slice %106 {offsets = [0, 128], sizes = [8, 128], strides = [1, 1]} : vector<8x256xf32> to vector<8x128xf32>
    %109 = vector.extract_strided_slice %100 {offsets = [0, 256], sizes = [8, 128], strides = [1, 1]} : vector<8x512xf32> to vector<8x128xf32>
    %110 = math.tanh %109 : vector<8x128xf32>
    %111 = vector.extract_strided_slice %100 {offsets = [0, 384], sizes = [8, 128], strides = [1, 1]} : vector<8x512xf32> to vector<8x128xf32>
    %112 = arith.negf %111 : vector<8x128xf32>
    %113 = math.exp %112 : vector<8x128xf32>
    %cst_42 = arith.constant 1.000000e+00 : f32
    %114 = vector.broadcast %cst_42 : f32 to vector<8x128xf32>
    %115 = arith.addf %114, %113 : vector<8x128xf32>
    %116 = arith.divf %114, %115 : vector<8x128xf32>
    %117 = arith.mulf %108, %92 : vector<8x128xf32>
    %118 = arith.mulf %107, %110 : vector<8x128xf32>
    %119 = arith.addf %117, %118 : vector<8x128xf32>
    %120 = math.tanh %119 : vector<8x128xf32>
    %121 = arith.mulf %116, %120 : vector<8x128xf32>
    %c4_i32 = arith.constant 4 : i32
    %122 = arith.index_cast %c4_i32 : i32 to index
    %c0_43 = arith.constant 0 : index
    %c0_44 = arith.constant 0 : index
    %123 = vector.load %arg7[%122, %c0_43, %c0_44] : memref<8x8x512xf32, #tpu.memory_space<vmem>>, vector<1x8x512xf32>
    %124 = vector.shape_cast %123 : vector<1x8x512xf32> to vector<8x512xf32>
    %c0_45 = arith.constant 0 : index
    %c0_46 = arith.constant 0 : index
    %125 = vector.load %arg4[%c0_45, %c0_46] : memref<128x512xf32, #tpu.memory_space<vmem>>, vector<128x512xf32>
    %cst_47 = arith.constant dense<0.000000e+00> : vector<8x512xf32>
    %126 = tpu.matmul %121, %125, %cst_47 {dimension_numbers = #tpu.dot_dimension_numbers<[1], [0], [0], [1], [0, 0, 1, 1], [], []>} : vector<8x128xf32>, vector<128x512xf32>, vector<8x512xf32> -> vector<8x512xf32>
    %127 = arith.addf %124, %126 : vector<8x512xf32>
    %128 = vector.extract_strided_slice %127 {offsets = [0, 0], sizes = [8, 256], strides = [1, 1]} : vector<8x512xf32> to vector<8x256xf32>
    %129 = arith.negf %128 : vector<8x256xf32>
    %130 = math.exp %129 : vector<8x256xf32>
    %cst_48 = arith.constant 1.000000e+00 : f32
    %131 = vector.broadcast %cst_48 : f32 to vector<8x256xf32>
    %132 = arith.addf %131, %130 : vector<8x256xf32>
    %133 = arith.divf %131, %132 : vector<8x256xf32>
    %134 = vector.extract_strided_slice %133 {offsets = [0, 0], sizes = [8, 128], strides = [1, 1]} : vector<8x256xf32> to vector<8x128xf32>
    %135 = vector.extract_strided_slice %133 {offsets = [0, 128], sizes = [8, 128], strides = [1, 1]} : vector<8x256xf32> to vector<8x128xf32>
    %136 = vector.extract_strided_slice %127 {offsets = [0, 256], sizes = [8, 128], strides = [1, 1]} : vector<8x512xf32> to vector<8x128xf32>
    %137 = math.tanh %136 : vector<8x128xf32>
    %138 = vector.extract_strided_slice %127 {offsets = [0, 384], sizes = [8, 128], strides = [1, 1]} : vector<8x512xf32> to vector<8x128xf32>
    %139 = arith.negf %138 : vector<8x128xf32>
    %140 = math.exp %139 : vector<8x128xf32>
    %cst_49 = arith.constant 1.000000e+00 : f32
    %141 = vector.broadcast %cst_49 : f32 to vector<8x128xf32>
    %142 = arith.addf %141, %140 : vector<8x128xf32>
    %143 = arith.divf %141, %142 : vector<8x128xf32>
    %144 = arith.mulf %135, %119 : vector<8x128xf32>
    %145 = arith.mulf %134, %137 : vector<8x128xf32>
    %146 = arith.addf %144, %145 : vector<8x128xf32>
    %147 = math.tanh %146 : vector<8x128xf32>
    %148 = arith.mulf %143, %147 : vector<8x128xf32>
    %c5_i32 = arith.constant 5 : i32
    %149 = arith.index_cast %c5_i32 : i32 to index
    %c0_50 = arith.constant 0 : index
    %c0_51 = arith.constant 0 : index
    %150 = vector.load %arg7[%149, %c0_50, %c0_51] : memref<8x8x512xf32, #tpu.memory_space<vmem>>, vector<1x8x512xf32>
    %151 = vector.shape_cast %150 : vector<1x8x512xf32> to vector<8x512xf32>
    %c0_52 = arith.constant 0 : index
    %c0_53 = arith.constant 0 : index
    %152 = vector.load %arg4[%c0_52, %c0_53] : memref<128x512xf32, #tpu.memory_space<vmem>>, vector<128x512xf32>
    %cst_54 = arith.constant dense<0.000000e+00> : vector<8x512xf32>
    %153 = tpu.matmul %148, %152, %cst_54 {dimension_numbers = #tpu.dot_dimension_numbers<[1], [0], [0], [1], [0, 0, 1, 1], [], []>} : vector<8x128xf32>, vector<128x512xf32>, vector<8x512xf32> -> vector<8x512xf32>
    %154 = arith.addf %151, %153 : vector<8x512xf32>
    %155 = vector.extract_strided_slice %154 {offsets = [0, 0], sizes = [8, 256], strides = [1, 1]} : vector<8x512xf32> to vector<8x256xf32>
    %156 = arith.negf %155 : vector<8x256xf32>
    %157 = math.exp %156 : vector<8x256xf32>
    %cst_55 = arith.constant 1.000000e+00 : f32
    %158 = vector.broadcast %cst_55 : f32 to vector<8x256xf32>
    %159 = arith.addf %158, %157 : vector<8x256xf32>
    %160 = arith.divf %158, %159 : vector<8x256xf32>
    %161 = vector.extract_strided_slice %160 {offsets = [0, 0], sizes = [8, 128], strides = [1, 1]} : vector<8x256xf32> to vector<8x128xf32>
    %162 = vector.extract_strided_slice %160 {offsets = [0, 128], sizes = [8, 128], strides = [1, 1]} : vector<8x256xf32> to vector<8x128xf32>
    %163 = vector.extract_strided_slice %154 {offsets = [0, 256], sizes = [8, 128], strides = [1, 1]} : vector<8x512xf32> to vector<8x128xf32>
    %164 = math.tanh %163 : vector<8x128xf32>
    %165 = vector.extract_strided_slice %154 {offsets = [0, 384], sizes = [8, 128], strides = [1, 1]} : vector<8x512xf32> to vector<8x128xf32>
    %166 = arith.negf %165 : vector<8x128xf32>
    %167 = math.exp %166 : vector<8x128xf32>
    %cst_56 = arith.constant 1.000000e+00 : f32
    %168 = vector.broadcast %cst_56 : f32 to vector<8x128xf32>
    %169 = arith.addf %168, %167 : vector<8x128xf32>
    %170 = arith.divf %168, %169 : vector<8x128xf32>
    %171 = arith.mulf %162, %146 : vector<8x128xf32>
    %172 = arith.mulf %161, %164 : vector<8x128xf32>
    %173 = arith.addf %171, %172 : vector<8x128xf32>
    %174 = math.tanh %173 : vector<8x128xf32>
    %175 = arith.mulf %170, %174 : vector<8x128xf32>
    %c6_i32 = arith.constant 6 : i32
    %176 = arith.index_cast %c6_i32 : i32 to index
    %c0_57 = arith.constant 0 : index
    %c0_58 = arith.constant 0 : index
    %177 = vector.load %arg7[%176, %c0_57, %c0_58] : memref<8x8x512xf32, #tpu.memory_space<vmem>>, vector<1x8x512xf32>
    %178 = vector.shape_cast %177 : vector<1x8x512xf32> to vector<8x512xf32>
    %c0_59 = arith.constant 0 : index
    %c0_60 = arith.constant 0 : index
    %179 = vector.load %arg4[%c0_59, %c0_60] : memref<128x512xf32, #tpu.memory_space<vmem>>, vector<128x512xf32>
    %cst_61 = arith.constant dense<0.000000e+00> : vector<8x512xf32>
    %180 = tpu.matmul %175, %179, %cst_61 {dimension_numbers = #tpu.dot_dimension_numbers<[1], [0], [0], [1], [0, 0, 1, 1], [], []>} : vector<8x128xf32>, vector<128x512xf32>, vector<8x512xf32> -> vector<8x512xf32>
    %181 = arith.addf %178, %180 : vector<8x512xf32>
    %182 = vector.extract_strided_slice %181 {offsets = [0, 0], sizes = [8, 256], strides = [1, 1]} : vector<8x512xf32> to vector<8x256xf32>
    %183 = arith.negf %182 : vector<8x256xf32>
    %184 = math.exp %183 : vector<8x256xf32>
    %cst_62 = arith.constant 1.000000e+00 : f32
    %185 = vector.broadcast %cst_62 : f32 to vector<8x256xf32>
    %186 = arith.addf %185, %184 : vector<8x256xf32>
    %187 = arith.divf %185, %186 : vector<8x256xf32>
    %188 = vector.extract_strided_slice %187 {offsets = [0, 0], sizes = [8, 128], strides = [1, 1]} : vector<8x256xf32> to vector<8x128xf32>
    %189 = vector.extract_strided_slice %187 {offsets = [0, 128], sizes = [8, 128], strides = [1, 1]} : vector<8x256xf32> to vector<8x128xf32>
    %190 = vector.extract_strided_slice %181 {offsets = [0, 256], sizes = [8, 128], strides = [1, 1]} : vector<8x512xf32> to vector<8x128xf32>
    %191 = math.tanh %190 : vector<8x128xf32>
    %192 = vector.extract_strided_slice %181 {offsets = [0, 384], sizes = [8, 128], strides = [1, 1]} : vector<8x512xf32> to vector<8x128xf32>
    %193 = arith.negf %192 : vector<8x128xf32>
    %194 = math.exp %193 : vector<8x128xf32>
    %cst_63 = arith.constant 1.000000e+00 : f32
    %195 = vector.broadcast %cst_63 : f32 to vector<8x128xf32>
    %196 = arith.addf %195, %194 : vector<8x128xf32>
    %197 = arith.divf %195, %196 : vector<8x128xf32>
    %198 = arith.mulf %189, %173 : vector<8x128xf32>
    %199 = arith.mulf %188, %191 : vector<8x128xf32>
    %200 = arith.addf %198, %199 : vector<8x128xf32>
    %201 = math.tanh %200 : vector<8x128xf32>
    %202 = arith.mulf %197, %201 : vector<8x128xf32>
    %c7_i32 = arith.constant 7 : i32
    %203 = arith.index_cast %c7_i32 : i32 to index
    %c0_64 = arith.constant 0 : index
    %c0_65 = arith.constant 0 : index
    %204 = vector.load %arg7[%203, %c0_64, %c0_65] : memref<8x8x512xf32, #tpu.memory_space<vmem>>, vector<1x8x512xf32>
    %205 = vector.shape_cast %204 : vector<1x8x512xf32> to vector<8x512xf32>
    %c0_66 = arith.constant 0 : index
    %c0_67 = arith.constant 0 : index
    %206 = vector.load %arg4[%c0_66, %c0_67] : memref<128x512xf32, #tpu.memory_space<vmem>>, vector<128x512xf32>
    %cst_68 = arith.constant dense<0.000000e+00> : vector<8x512xf32>
    %207 = tpu.matmul %202, %206, %cst_68 {dimension_numbers = #tpu.dot_dimension_numbers<[1], [0], [0], [1], [0, 0, 1, 1], [], []>} : vector<8x128xf32>, vector<128x512xf32>, vector<8x512xf32> -> vector<8x512xf32>
    %208 = arith.addf %205, %207 : vector<8x512xf32>
    %209 = vector.extract_strided_slice %208 {offsets = [0, 0], sizes = [8, 256], strides = [1, 1]} : vector<8x512xf32> to vector<8x256xf32>
    %210 = arith.negf %209 : vector<8x256xf32>
    %211 = math.exp %210 : vector<8x256xf32>
    %cst_69 = arith.constant 1.000000e+00 : f32
    %212 = vector.broadcast %cst_69 : f32 to vector<8x256xf32>
    %213 = arith.addf %212, %211 : vector<8x256xf32>
    %214 = arith.divf %212, %213 : vector<8x256xf32>
    %215 = vector.extract_strided_slice %214 {offsets = [0, 0], sizes = [8, 128], strides = [1, 1]} : vector<8x256xf32> to vector<8x128xf32>
    %216 = vector.extract_strided_slice %214 {offsets = [0, 128], sizes = [8, 128], strides = [1, 1]} : vector<8x256xf32> to vector<8x128xf32>
    %217 = vector.extract_strided_slice %208 {offsets = [0, 256], sizes = [8, 128], strides = [1, 1]} : vector<8x512xf32> to vector<8x128xf32>
    %218 = math.tanh %217 : vector<8x128xf32>
    %219 = vector.extract_strided_slice %208 {offsets = [0, 384], sizes = [8, 128], strides = [1, 1]} : vector<8x512xf32> to vector<8x128xf32>
    %220 = arith.negf %219 : vector<8x128xf32>
    %221 = math.exp %220 : vector<8x128xf32>
    %cst_70 = arith.constant 1.000000e+00 : f32
    %222 = vector.broadcast %cst_70 : f32 to vector<8x128xf32>
    %223 = arith.addf %222, %221 : vector<8x128xf32>
    %224 = arith.divf %222, %223 : vector<8x128xf32>
    %225 = arith.mulf %216, %200 : vector<8x128xf32>
    %226 = arith.mulf %215, %218 : vector<8x128xf32>
    %227 = arith.addf %225, %226 : vector<8x128xf32>
    %228 = math.tanh %227 : vector<8x128xf32>
    %229 = arith.mulf %224, %228 : vector<8x128xf32>
    %c8_i32 = arith.constant 8 : i32
    %c0_71 = arith.constant 0 : index
    %c0_72 = arith.constant 0 : index
    %230 = vector.load %arg8[%c0_71, %c0_72] : memref<8x128xf32, #tpu.memory_space<vmem>>, vector<8x128xf32>
    tpu.vector_store %arg8[%c0_71, %c0_72], %229 {strides = array<i32>} : memref<8x128xf32, #tpu.memory_space<vmem>>, vector<8x128xf32>,
    %c0_73 = arith.constant 0 : index
    %c0_74 = arith.constant 0 : index
    %231 = vector.load %arg9[%c0_73, %c0_74] : memref<8x128xf32, #tpu.memory_space<vmem>>, vector<8x128xf32>
    tpu.vector_store %arg9[%c0_73, %c0_74], %227 {strides = array<i32>} : memref<8x128xf32, #tpu.memory_space<vmem>>, vector<8x128xf32>,
    %c0_75 = arith.constant 0 : index
    %c0_76 = arith.constant 0 : index
    %232 = vector.load %arg6[%c0_75, %c0_76] : memref<8x128xf32, #tpu.memory_space<vmem>>, vector<8x128xf32>
    tpu.vector_store %arg6[%c0_75, %c0_76], %229 {strides = array<i32>} : memref<8x128xf32, #tpu.memory_space<vmem>>, vector<8x128xf32>,
    return
  }
  func.func @transform_0(%arg0: i32, %arg1: i32) -> (i32, i32, i32) {
    %c0_i32 = arith.constant 0 : i32
    %c0_i32_0 = arith.constant 0 : i32
    return %arg1, %arg0, %c0_i32 : i32, i32, i32
  }
  func.func @transform_1(%arg0: i32, %arg1: i32) -> (i32, i32) {
    %c0_i32 = arith.constant 0 : i32
    %c0_i32_0 = arith.constant 0 : i32
    %c0_i32_1 = arith.constant 0 : i32
    return %c0_i32, %c0_i32_0 : i32, i32
  }
  func.func @transform_2(%arg0: i32, %arg1: i32) -> (i32, i32) {
    %c0_i32 = arith.constant 0 : i32
    %c0_i32_0 = arith.constant 0 : i32
    %c0_i32_1 = arith.constant 0 : i32
    return %c0_i32, %c0_i32_0 : i32, i32
  }
  func.func @transform_3(%arg0: i32, %arg1: i32) -> (i32, i32) {
    %c0_i32 = arith.constant 0 : i32
    %c0_i32_0 = arith.constant 0 : i32
    %c0_i32_1 = arith.constant 0 : i32
    return %c0_i32, %c0_i32_0 : i32, i32
  }
  func.func @transform_4(%arg0: i32, %arg1: i32) -> (i32, i32) {
    %c0_i32 = arith.constant 0 : i32
    %c0_i32_0 = arith.constant 0 : i32
    return %arg0, %c0_i32 : i32, i32
  }
}

</mosaic_0001>

<llo_original>
// kernel: tpu_custom_call.1
$region0: #{tpu_custom_call.1}
  #allocation0 [shape = 'u32[]', space=smem, size = 0x4, offset = 0x4, fixed_abs, tag = 'smem constant byte address 0x4 - core index']
  #allocation1 [shape = 'u32[144,128]{1,0:T(1,128)}', space=vmem, size = 0x12000, scoped, tag = 'internal scratch']
  #allocation2 [shape = 'f32[8,8,512]{2,1,0:T(8,128)}', space=vmem, size = 0x20000, scoped, tag = 'scratch operand']
  #allocation3 [shape = 'f32[8,128]{1,0:T(8,128)}', space=vmem, size = 0x1000, scoped, tag = 'scratch operand']
  #allocation4 [shape = 'f32[8,128]{1,0:T(8,128)}', space=vmem, size = 0x1000, scoped, tag = 'scratch operand']
  %s0 = inlined_call_operand.hbm [shape: f32[8,8,128], index: 0, kind: input, shape index: {}]
  %s1 = inlined_call_operand.hbm [shape: f32[128,512], index: 1, kind: input, shape index: {}]
  %s2 = inlined_call_operand.hbm [shape: f32[128,512], index: 2, kind: input, shape index: {}]
  %s3 = inlined_call_operand.vmem [shape: f32[1,512], index: 3, kind: input, shape index: {}]
  %s4 = inlined_call_operand.hbm [shape: f32[8,128], index: 4, kind: output, shape index: {}]
  %s5 = sld [smem:[#allocation0]]
  $region42: #{tpu_custom_call.1} parent=0
    _
  %s7 = ssub.s32 1, %s5
  %s8 = scalar_select 0, %s7, %s5
  $region1: #{tpu_custom_call.1} parent=0
    #allocation5 [shape = 'u8[32768]{0}', space=vmem, size = 0x8000, scoped, tag = 'input window, operand 0, single buffered']
    #allocation6 [shape = 's32[1]{0}', space=sflag, size = 0x4, scoped, tag = 'scoped memory for tpu_custom_call.1']
    #allocation7 [shape = 's32[1]{0}', space=sflag, size = 0x4, scoped, tag = 'scoped memory for tpu_custom_call.1']
    #allocation8 [shape = 'u8[262144]{0}', space=vmem, size = 0x40000, scoped, tag = 'input window, operand 1, single buffered']
    #allocation9 [shape = 's32[1]{0}', space=sflag, size = 0x4, scoped, tag = 'scoped memory for tpu_custom_call.1']
    #allocation10 [shape = 'u8[262144]{0}', space=vmem, size = 0x40000, scoped, tag = 'input window, operand 2, single buffered']
    #allocation11 [shape = 'u8[4096]{0}', space=vmem, size = 0x1000, scoped, tag = 'output window, operand 0, single buffered']
    %9 = vsyncpa [#allocation6], 0
    %10 = vsyncpa [#allocation9], 0
    %11 = vsyncpa [#allocation7], 0
    // Predicated region
    $region2: #{tpu_custom_call.1} parent=1 // pred_check
      _
    $region3: #{tpu_custom_call.1} parent=1 // pred_check_branch
      %13 = sbr.rel (0) target = $region5
    $region4: #{tpu_custom_call.1} parent=1 // pred_region
      %s15 = ssub.s32 1024, 1024
      %16 = vsyncadd [#allocation6], %s15
      %s17 = sshll.u32 [#allocation5], 4
      %s18 = int_to_ptr.vmem [resolvable:$true] %s17
      %23 = dma.hbm_to_vmem [thread:$0]  %s0, 1024, %s18, [#allocation6], 128, 128, 8
    $region5: #{tpu_custom_call.1} parent=1 // pred_fallthru
      _
    // Predicated region
    $region6: #{tpu_custom_call.1} parent=1 // pred_check
      _
    $region7: #{tpu_custom_call.1} parent=1 // pred_check_branch
      %25 = sbr.rel (0) target = $region9
    $region8: #{tpu_custom_call.1} parent=1 // pred_region
      %s27 = ssub.s32 8192, 8192
      %28 = vsyncadd [#allocation9], %s27
      %s29 = sshll.u32 [#allocation8], 4
      %s30 = int_to_ptr.vmem [resolvable:$true] %s29
      %35 = dma.hbm_to_vmem [thread:$0]  %s1, 8192, %s30, [#allocation9], 512, 512, 32
    $region9: #{tpu_custom_call.1} parent=1 // pred_fallthru
      _
    // Predicated region
    $region10: #{tpu_custom_call.1} parent=1 // pred_check
      _
    $region11: #{tpu_custom_call.1} parent=1 // pred_check_branch
      %37 = sbr.rel (0) target = $region13
    $region12: #{tpu_custom_call.1} parent=1 // pred_region
      %s39 = ssub.s32 8192, 8192
      %40 = vsyncadd [#allocation9], %s39
      %s41 = sshll.u32 [#allocation10], 4
      %s42 = int_to_ptr.vmem [resolvable:$true] %s41
      %47 = dma.hbm_to_vmem [thread:$0]  %s2, 8192, %s42, [#allocation9], 512, 512, 32
    $region13: #{tpu_custom_call.1} parent=1 // pred_fallthru
      _
    // Predicated region
    $region14: #{tpu_custom_call.1} parent=1 // pred_check
      _
    $region15: #{tpu_custom_call.1} parent=1 // pred_check_branch
      %49 = sbr.rel (0) target = $region17
    $region16: #{tpu_custom_call.1} parent=1 // pred_region
      _
    $region17: #{tpu_custom_call.1} parent=1 // pred_fallthru
      _
    // Predicated region
    $region18: #{tpu_custom_call.1} parent=1 // pred_check
      _
    $region19: #{tpu_custom_call.1} parent=1 // pred_check_branch
      %51 = sbr.rel (0) target = $region21
    $region20: #{tpu_custom_call.1} parent=1 // pred_region
      %52 = dma.done [#allocation6], 1024
    $region21: #{tpu_custom_call.1} parent=1 // pred_fallthru
      _
    // Predicated region
    $region22: #{tpu_custom_call.1} parent=1 // pred_check
      _
    $region23: #{tpu_custom_call.1} parent=1 // pred_check_branch
      %54 = sbr.rel (0) target = $region25
    $region24: #{tpu_custom_call.1} parent=1 // pred_region
      %55 = dma.done [#allocation9], 8192
    $region25: #{tpu_custom_call.1} parent=1 // pred_fallthru
      _
    // Predicated region
    $region26: #{tpu_custom_call.1} parent=1 // pred_check
      _
    $region27: #{tpu_custom_call.1} parent=1 // pred_check_branch
      %57 = sbr.rel (0) target = $region29
    $region28: #{tpu_custom_call.1} parent=1 // pred_region
      %58 = dma.done [#allocation9], 8192
    $region29: #{tpu_custom_call.1} parent=1 // pred_fallthru
      _
    %p59 = scmp.eq.s32.totalorder 0, 0
    // Predicated region
    $region30: #{tpu_custom_call.1} parent=1 // pred_check
      %p60 = pneg %p59
    $region31: #{tpu_custom_call.1} parent=1 // pred_check_branch
      %62 = sbr.rel (%p60) target = $region33
    $region32: #{tpu_custom_call.1} parent=1 // pred_region
      %63 = vst [vmem:[#allocation3] sm:$0xff] 0.0
      %64 = vst [vmem:[#allocation4] sm:$0xff] 0.0
    $region33: #{tpu_custom_call.1} parent=1 // pred_fallthru
      _
    %v65 = vld [vmem:[#allocation5] sm:$0xff]
    %v66 = vld [vmem:[#allocation5 + $0x8] sm:$0xff]
    %v67 = vld [vmem:[#allocation5 + $0x10] sm:$0xff]
    %v68 = vld [vmem:[#allocation5 + $0x18] sm:$0xff]
    %v69 = vld [vmem:[#allocation5 + $0x20] sm:$0xff]
    %v70 = vld [vmem:[#allocation5 + $0x28] sm:$0xff]
    %v71 = vld [vmem:[#allocation5 + $0x30] sm:$0xff]
    %v72 = vld [vmem:[#allocation5 + $0x38] sm:$0xff]
    %v73 = vld [vmem:[#allocation8] sm:$0xff]
    %v74 = vld [vmem:[#allocation8 + $0x8] sm:$0xff]
    %v75 = vld [vmem:[#allocation8 + $0x10] sm:$0xff]
    %v76 = vld [vmem:[#allocation8 + $0x18] sm:$0xff]
    %v77 = vld [vmem:[#allocation8 + $0x20] sm:$0xff]
    %v78 = vld [vmem:[#allocation8 + $0x28] sm:$0xff]
    %v79 = vld [vmem:[#allocation8 + $0x30] sm:$0xff]
    %v80 = vld [vmem:[#allocation8 + $0x38] sm:$0xff]
    %v81 = vld [vmem:[#allocation8 + $0x40] sm:$0xff]
    %v82 = vld [vmem:[#allocation8 + $0x48] sm:$0xff]
    %v83 = vld [vmem:[#allocation8 + $0x50] sm:$0xff]
    %v84 = vld [vmem:[#allocation8 + $0x58] sm:$0xff]
    %v85 = vld [vmem:[#allocation8 + $0x60] sm:$0xff]
    %v86 = vld [vmem:[#allocation8 + $0x68] sm:$0xff]
    %v87 = vld [vmem:[#allocation8 + $0x70] sm:$0xff]
    %v88 = vld [vmem:[#allocation8 + $0x78] sm:$0xff]
    %v89 = vld [vmem:[#allocation8 + $0x80] sm:$0xff]
    %v90 = vld [vmem:[#allocation8 + $0x88] sm:$0xff]
    %v91 = vld [vmem:[#allocation8 + $0x90] sm:$0xff]
    %v92 = vld [vmem:[#allocation8 + $0x98] sm:$0xff]
    %v93 = vld [vmem:[#allocation8 + $0xa0] sm:$0xff]
    %v94 = vld [vmem:[#allocation8 + $0xa8] sm:$0xff]
    %v95 = vld [vmem:[#allocation8 + $0xb0] sm:$0xff]
    %v96 = vld [vmem:[#allocation8 + $0xb8] sm:$0xff]
    %v97 = vld [vmem:[#allocation8 + $0xc0] sm:$0xff]
    %v98 = vld [vmem:[#allocation8 + $0xc8] sm:$0xff]
    %v99 = vld [vmem:[#allocation8 + $0xd0] sm:$0xff]
    %v100 = vld [vmem:[#allocation8 + $0xd8] sm:$0xff]
    %v101 = vld [vmem:[#allocation8 + $0xe0] sm:$0xff]
    %v102 = vld [vmem:[#allocation8 + $0xe8] sm:$0xff]
    %v103 = vld [vmem:[#allocation8 + $0xf0] sm:$0xff]
    %v104 = vld [vmem:[#allocation8 + $0xf8] sm:$0xff]
    %v105 = vld [vmem:[#allocation8 + $0x100] sm:$0xff]
    %v106 = vld [vmem:[#allocation8 + $0x108] sm:$0xff]
    %v107 = vld [vmem:[#allocation8 + $0x110] sm:$0xff]
    %v108 = vld [vmem:[#allocation8 + $0x118] sm:$0xff]
    %v109 = vld [vmem:[#allocation8 + $0x120] sm:$0xff]
    %v110 = vld [vmem:[#allocation8 + $0x128] sm:$0xff]
    %v111 = vld [vmem:[#allocation8 + $0x130] sm:$0xff]
    %v112 = vld [vmem:[#allocation8 + $0x138] sm:$0xff]
    %v113 = vld [vmem:[#allocation8 + $0x140] sm:$0xff]
    %v114 = vld [vmem:[#allocation8 + $0x148] sm:$0xff]
    %v115 = vld [vmem:[#allocation8 + $0x150] sm:$0xff]
    %v116 = vld [vmem:[#allocation8 + $0x158] sm:$0xff]
    %v117 = vld [vmem:[#allocation8 + $0x160] sm:$0xff]
    %v118 = vld [vmem:[#allocation8 + $0x168] sm:$0xff]
    %v119 = vld [vmem:[#allocation8 + $0x170] sm:$0xff]
    %v120 = vld [vmem:[#allocation8 + $0x178] sm:$0xff]
    %v121 = vld [vmem:[#allocation8 + $0x180] sm:$0xff]
    %v122 = vld [vmem:[#allocation8 + $0x188] sm:$0xff]
    %v123 = vld [vmem:[#allocation8 + $0x190] sm:$0xff]
    %v124 = vld [vmem:[#allocation8 + $0x198] sm:$0xff]
    %v125 = vld [vmem:[#allocation8 + $0x1a0] sm:$0xff]
    %v126 = vld [vmem:[#allocation8 + $0x1a8] sm:$0xff]
    %v127 = vld [vmem:[#allocation8 + $0x1b0] sm:$0xff]
    %v128 = vld [vmem:[#allocation8 + $0x1b8] sm:$0xff]
    %v129 = vld [vmem:[#allocation8 + $0x1c0] sm:$0xff]
    %v130 = vld [vmem:[#allocation8 + $0x1c8] sm:$0xff]
    %v131 = vld [vmem:[#allocation8 + $0x1d0] sm:$0xff]
    %v132 = vld [vmem:[#allocation8 + $0x1d8] sm:$0xff]
    %v133 = vld [vmem:[#allocation8 + $0x1e0] sm:$0xff]
    %v134 = vld [vmem:[#allocation8 + $0x1e8] sm:$0xff]
    %v135 = vld [vmem:[#allocation8 + $0x1f0] sm:$0xff]
    %v136 = vld [vmem:[#allocation8 + $0x1f8] sm:$0xff]
    %v137 = vld [vmem:[%s3] sm:$0xf]
    %v139 = vlaneseq
    %v140 = vshrl.u32 %v139, 7
    %v141 = vsub.s32 0, %v140
    %v142 = vrot.slane %v137, %v141
    %v143 = vlaneseq
    %v144 = vshrl.u32 %v143, 7
    %v145 = vsub.s32 1, %v144
    %v146 = vrot.slane %v137, %v145
    %v147 = vlaneseq
    %v148 = vshrl.u32 %v147, 7
    %v149 = vsub.s32 2, %v148
    %v150 = vrot.slane %v137, %v149
    %v151 = vlaneseq
    %v152 = vshrl.u32 %v151, 7
    %v153 = vsub.s32 3, %v152
    %v154 = vrot.slane %v137, %v153
    %159 = vmatprep.subr.mxu0 %v134
    %160 = vmatpush1.msra.mxu0 %v133
    %161 = vmatprep.subr.mxu0 %v130
    %162 = vmatpush1.msra.mxu0 %v129
    %163 = vmatprep.subr.mxu0 %v126
    %164 = vmatpush1.msra.mxu0 %v125
    %165 = vmatprep.subr.mxu0 %v122
    %166 = vmatpush1.msra.mxu0 %v121
    %167 = vmatprep.subr.mxu0 %v118
    %168 = vmatpush1.msra.mxu0 %v117
    %169 = vmatprep.subr.mxu0 %v114
    %170 = vmatpush1.msra.mxu0 %v113
    %171 = vmatprep.subr.mxu0 %v110
    %172 = vmatpush1.msra.mxu0 %v109
    %173 = vmatprep.subr.mxu0 %v106
    %174 = vmatpush1.msra.mxu0 %v105
    %175 = vmatprep.subr.mxu0 %v102
    %176 = vmatpush1.msra.mxu0 %v101
    %177 = vmatprep.subr.mxu0 %v98
    %178 = vmatpush1.msra.mxu0 %v97
    %179 = vmatprep.subr.mxu0 %v94
    %180 = vmatpush1.msra.mxu0 %v93
    %181 = vmatprep.subr.mxu0 %v90
    %182 = vmatpush1.msra.mxu0 %v89
    %183 = vmatprep.subr.mxu0 %v86
    %184 = vmatpush1.msra.mxu0 %v85
    %185 = vmatprep.subr.mxu0 %v82
    %186 = vmatpush1.msra.mxu0 %v81
    %187 = vmatprep.subr.mxu0 %v78
    %188 = vmatpush1.msra.mxu0 %v77
    %189 = vmatprep.subr.mxu0 %v74
    %190 = vmatpush1.msra.mxu0 %v73
    %191 = vmatprep.subr.mxu0 0.0
    %192 = vmatpush2.msra.mxu0 0.0
    %193 = vmatprep.subr.mxu0 0.0
    %194 = vmatpush2.msra.mxu0 0.0
    %195 = vmatprep.subr.mxu0 0.0
    %196 = vmatpush2.msra.mxu0 0.0
    %197 = vmatprep.subr.mxu0 0.0
    %198 = vmatpush2.msra.mxu0 0.0
    %199 = vmatprep.subr.mxu0 0.0
    %200 = vmatpush2.msra.mxu0 0.0
    %201 = vmatprep.subr.mxu0 0.0
    %202 = vmatpush2.msra.mxu0 0.0
    %203 = vmatprep.subr.mxu0 0.0
    %204 = vmatpush2.msra.mxu0 0.0
    %205 = vmatprep.subr.mxu0 0.0
    %206 = vmatpush2.msra.mxu0 0.0
    %207 = vmatprep.subr.mxu0 0.0
    %208 = vmatpush2.msra.mxu0 0.0
    %209 = vmatprep.subr.mxu0 0.0
    %210 = vmatpush2.msra.mxu0 0.0
    %211 = vmatprep.subr.mxu0 0.0
    %212 = vmatpush2.msra.mxu0 0.0
    %213 = vmatprep.subr.mxu0 0.0
    %214 = vmatpush2.msra.mxu0 0.0
    %215 = vmatprep.subr.mxu0 0.0
    %216 = vmatpush2.msra.mxu0 0.0
    %217 = vmatprep.subr.mxu0 0.0
    %218 = vmatpush2.msra.mxu0 0.0
    %219 = vmatprep.subr.mxu0 0.0
    %220 = vmatpush2.msra.mxu0 0.0
    %221 = vmatprep.subr.mxu0 0.0
    %222 = vmatpush2.msra.mxu0 0.0
    %223 = vmatprep.mubr.f32.mxu0 0.0
    %224 = vmatmul.mubr.f32.gmra.mxu0 %v65
    %v225 = vpop.f32.mrf.mxu0
    %v226 = vadd.f32 %v142, %v225
    %v227 = vpop.f32.mrf.mxu0
    %v228 = vadd.f32 %v146, %v227
    %229 = vmatprep.mubr.f32.mxu0 0.0
    %230 = vmatmul.mubr.f32.gmra.mxu0 %v66
    %v231 = vpop.f32.mrf.mxu0
    %v232 = vadd.f32 %v142, %v231
    %v233 = vpop.f32.mrf.mxu0
    %v234 = vadd.f32 %v146, %v233
    %235 = vmatprep.mubr.f32.mxu0 0.0
    %236 = vmatmul.mubr.f32.gmra.mxu0 %v67
    %v237 = vpop.f32.mrf.mxu0
    %v238 = vadd.f32 %v142, %v237
    %v239 = vpop.f32.mrf.mxu0
    %v240 = vadd.f32 %v146, %v239
    %241 = vmatprep.mubr.f32.mxu0 0.0
    %242 = vmatmul.mubr.f32.gmra.mxu0 %v68
    %v243 = vpop.f32.mrf.mxu0
    %v244 = vadd.f32 %v142, %v243
    %v245 = vpop.f32.mrf.mxu0
    %v246 = vadd.f32 %v146, %v245
    %247 = vmatprep.mubr.f32.mxu0 0.0
    %248 = vmatmul.mubr.f32.gmra.mxu0 %v69
    %v249 = vpop.f32.mrf.mxu0
    %v250 = vadd.f32 %v142, %v249
    %v251 = vpop.f32.mrf.mxu0
    %v252 = vadd.f32 %v146, %v251
    %253 = vmatprep.mubr.f32.mxu0 0.0
    %254 = vmatmul.mubr.f32.gmra.mxu0 %v70
    %v255 = vpop.f32.mrf.mxu0
    %v256 = vadd.f32 %v142, %v255
    %v257 = vpop.f32.mrf.mxu0
    %v258 = vadd.f32 %v146, %v257
    %259 = vmatprep.mubr.f32.mxu0 0.0
    %260 = vmatmul.mubr.f32.gmra.mxu0 %v71
    %v261 = vpop.f32.mrf.mxu0
    %v262 = vadd.f32 %v142, %v261
    %v263 = vpop.f32.mrf.mxu0
    %v264 = vadd.f32 %v146, %v263
    %265 = vmatprep.mubr.f32.mxu0 0.0
    %266 = vmatmul.mubr.f32.gmra.mxu0 %v72
    %v267 = vpop.f32.mrf.mxu0
    %v268 = vadd.f32 %v142, %v267
    %v269 = vpop.f32.mrf.mxu0
    %v270 = vadd.f32 %v146, %v269
    %271 = vdwg.mxu0
    %272 = vmatprep.subr.mxu0 %v136
    %273 = vmatpush1.msra.mxu0 %v135
    %274 = vmatprep.subr.mxu0 %v132
    %275 = vmatpush1.msra.mxu0 %v131
    %276 = vmatprep.subr.mxu0 %v128
    %277 = vmatpush1.msra.mxu0 %v127
    %278 = vmatprep.subr.mxu0 %v124
    %279 = vmatpush1.msra.mxu0 %v123
    %280 = vmatprep.subr.mxu0 %v120
    %281 = vmatpush1.msra.mxu0 %v119
    %282 = vmatprep.subr.mxu0 %v116
    %283 = vmatpush1.msra.mxu0 %v115
    %284 = vmatprep.subr.mxu0 %v112
    %285 = vmatpush1.msra.mxu0 %v111
    %286 = vmatprep.subr.mxu0 %v108
    %287 = vmatpush1.msra.mxu0 %v107
    %288 = vmatprep.subr.mxu0 %v104
    %289 = vmatpush1.msra.mxu0 %v103
    %290 = vmatprep.subr.mxu0 %v100
    %291 = vmatpush1.msra.mxu0 %v99
    %292 = vmatprep.subr.mxu0 %v96
    %293 = vmatpush1.msra.mxu0 %v95
    %294 = vmatprep.subr.mxu0 %v92
    %295 = vmatpush1.msra.mxu0 %v91
    %296 = vmatprep.subr.mxu0 %v88
    %297 = vmatpush1.msra.mxu0 %v87
    %298 = vmatprep.subr.mxu0 %v84
    %299 = vmatpush1.msra.mxu0 %v83
    %300 = vmatprep.subr.mxu0 %v80
    %301 = vmatpush1.msra.mxu0 %v79
    %302 = vmatprep.subr.mxu0 %v76
    %303 = vmatpush1.msra.mxu0 %v75
    %304 = vmatprep.subr.mxu0 0.0
    %305 = vmatpush2.msra.mxu0 0.0
    %306 = vmatprep.subr.mxu0 0.0
    %307 = vmatpush2.msra.mxu0 0.0
    %308 = vmatprep.subr.mxu0 0.0
    %309 = vmatpush2.msra.mxu0 0.0
    %310 = vmatprep.subr.mxu0 0.0
    %311 = vmatpush2.msra.mxu0 0.0
    %312 = vmatprep.subr.mxu0 0.0
    %313 = vmatpush2.msra.mxu0 0.0
    %314 = vmatprep.subr.mxu0 0.0
    %315 = vmatpush2.msra.mxu0 0.0
    %316 = vmatprep.subr.mxu0 0.0
    %317 = vmatpush2.msra.mxu0 0.0
    %318 = vmatprep.subr.mxu0 0.0
    %319 = vmatpush2.msra.mxu0 0.0
    %320 = vmatprep.subr.mxu0 0.0
    %321 = vmatpush2.msra.mxu0 0.0
    %322 = vmatprep.subr.mxu0 0.0
    %323 = vmatpush2.msra.mxu0 0.0
    %324 = vmatprep.subr.mxu0 0.0
    %325 = vmatpush2.msra.mxu0 0.0
    %326 = vmatprep.subr.mxu0 0.0
    %327 = vmatpush2.msra.mxu0 0.0
    %328 = vmatprep.subr.mxu0 0.0
    %329 = vmatpush2.msra.mxu0 0.0
    %330 = vmatprep.subr.mxu0 0.0
    %331 = vmatpush2.msra.mxu0 0.0
    %332 = vmatprep.subr.mxu0 0.0
    %333 = vmatpush2.msra.mxu0 0.0
    %334 = vmatprep.subr.mxu0 0.0
    %335 = vmatpush2.msra.mxu0 0.0
    %336 = vmatprep.mubr.f32.mxu0 0.0
    %337 = vmatmul.mubr.f32.gmra.mxu0 %v65
    %v338 = vpop.f32.mrf.mxu0
    %v339 = vadd.f32 %v150, %v338
    %v340 = vpop.f32.mrf.mxu0
    %v341 = vadd.f32 %v154, %v340
    %342 = vmatprep.mubr.f32.mxu0 0.0
    %343 = vmatmul.mubr.f32.gmra.mxu0 %v66
    %v344 = vpop.f32.mrf.mxu0
    %v345 = vadd.f32 %v150, %v344
    %v346 = vpop.f32.mrf.mxu0
    %v347 = vadd.f32 %v154, %v346
    %348 = vmatprep.mubr.f32.mxu0 0.0
    %349 = vmatmul.mubr.f32.gmra.mxu0 %v67
    %v350 = vpop.f32.mrf.mxu0
    %v351 = vadd.f32 %v150, %v350
    %v352 = vpop.f32.mrf.mxu0
    %v353 = vadd.f32 %v154, %v352
    %354 = vmatprep.mubr.f32.mxu0 0.0
    %355 = vmatmul.mubr.f32.gmra.mxu0 %v68
    %v356 = vpop.f32.mrf.mxu0
    %v357 = vadd.f32 %v150, %v356
    %v358 = vpop.f32.mrf.mxu0
    %v359 = vadd.f32 %v154, %v358
    %360 = vmatprep.mubr.f32.mxu0 0.0
    %361 = vmatmul.mubr.f32.gmra.mxu0 %v69
    %v362 = vpop.f32.mrf.mxu0
    %v363 = vadd.f32 %v150, %v362
    %v364 = vpop.f32.mrf.mxu0
    %v365 = vadd.f32 %v154, %v364
    %366 = vmatprep.mubr.f32.mxu0 0.0
    %367 = vmatmul.mubr.f32.gmra.mxu0 %v70
    %v368 = vpop.f32.mrf.mxu0
    %v369 = vadd.f32 %v150, %v368
    %v370 = vpop.f32.mrf.mxu0
    %v371 = vadd.f32 %v154, %v370
    %372 = vmatprep.mubr.f32.mxu0 0.0
    %373 = vmatmul.mubr.f32.gmra.mxu0 %v71
    %v374 = vpop.f32.mrf.mxu0
    %v375 = vadd.f32 %v150, %v374
    %v376 = vpop.f32.mrf.mxu0
    %v377 = vadd.f32 %v154, %v376
    %378 = vmatprep.mubr.f32.mxu0 0.0
    %379 = vmatmul.mubr.f32.gmra.mxu0 %v72
    %v380 = vpop.f32.mrf.mxu0
    %v381 = vadd.f32 %v150, %v380
    %v382 = vpop.f32.mrf.mxu0
    %v383 = vadd.f32 %v154, %v382
    %384 = vdwg.mxu0
    %385 = vst [vmem:[#allocation2] sm:$0xff] %v226
    %386 = vst [vmem:[#allocation2 + $0x8] sm:$0xff] %v228
    %387 = vst [vmem:[#allocation2 + $0x10] sm:$0xff] %v339
    %388 = vst [vmem:[#allocation2 + $0x18] sm:$0xff] %v341
    %389 = vst [vmem:[#allocation2 + $0x20] sm:$0xff] %v232
    %390 = vst [vmem:[#allocation2 + $0x28] sm:$0xff] %v234
    %391 = vst [vmem:[#allocation2 + $0x30] sm:$0xff] %v345
    %392 = vst [vmem:[#allocation2 + $0x38] sm:$0xff] %v347
    %393 = vst [vmem:[#allocation2 + $0x40] sm:$0xff] %v238
    %394 = vst [vmem:[#allocation2 + $0x48] sm:$0xff] %v240
    %395 = vst [vmem:[#allocation2 + $0x50] sm:$0xff] %v351
    %396 = vst [vmem:[#allocation2 + $0x58] sm:$0xff] %v353
    %397 = vst [vmem:[#allocation2 + $0x60] sm:$0xff] %v244
    %398 = vst [vmem:[#allocation2 + $0x68] sm:$0xff] %v246
    %399 = vst [vmem:[#allocation2 + $0x70] sm:$0xff] %v357
    %400 = vst [vmem:[#allocation2 + $0x78] sm:$0xff] %v359
    %401 = vst [vmem:[#allocation2 + $0x80] sm:$0xff] %v250
    %402 = vst [vmem:[#allocation2 + $0x88] sm:$0xff] %v252
    %403 = vst [vmem:[#allocation2 + $0x90] sm:$0xff] %v363
    %404 = vst [vmem:[#allocation2 + $0x98] sm:$0xff] %v365
    %405 = vst [vmem:[#allocation2 + $0xa0] sm:$0xff] %v256
    %406 = vst [vmem:[#allocation2 + $0xa8] sm:$0xff] %v258
    %407 = vst [vmem:[#allocation2 + $0xb0] sm:$0xff] %v369
    %408 = vst [vmem:[#allocation2 + $0xb8] sm:$0xff] %v371
    %409 = vst [vmem:[#allocation2 + $0xc0] sm:$0xff] %v262
    %410 = vst [vmem:[#allocation2 + $0xc8] sm:$0xff] %v264
    %411 = vst [vmem:[#allocation2 + $0xd0] sm:$0xff] %v375
    %412 = vst [vmem:[#allocation2 + $0xd8] sm:$0xff] %v377
    %413 = vst [vmem:[#allocation2 + $0xe0] sm:$0xff] %v268
    %414 = vst [vmem:[#allocation2 + $0xe8] sm:$0xff] %v270
    %415 = vst [vmem:[#allocation2 + $0xf0] sm:$0xff] %v381
    %416 = vst [vmem:[#allocation2 + $0xf8] sm:$0xff] %v383
    %v417 = vld [vmem:[#allocation3] sm:$0xff]
    %v418 = vld [vmem:[#allocation4] sm:$0xff]
    %v419 = vld [vmem:[#allocation2] sm:$0xff]
    %v420 = vld [vmem:[#allocation2 + $0x8] sm:$0xff]
    %v421 = vld [vmem:[#allocation2 + $0x10] sm:$0xff]
    %v422 = vld [vmem:[#allocation2 + $0x18] sm:$0xff]
    %v423 = vld [vmem:[#allocation10] sm:$0xff]
    %v424 = vld [vmem:[#allocation10 + $0x8] sm:$0xff]
    %v425 = vld [vmem:[#allocation10 + $0x10] sm:$0xff]
    %v426 = vld [vmem:[#allocation10 + $0x18] sm:$0xff]
    %v427 = vld [vmem:[#allocation10 + $0x20] sm:$0xff]
    %v428 = vld [vmem:[#allocation10 + $0x28] sm:$0xff]
    %v429 = vld [vmem:[#allocation10 + $0x30] sm:$0xff]
    %v430 = vld [vmem:[#allocation10 + $0x38] sm:$0xff]
    %v431 = vld [vmem:[#allocation10 + $0x40] sm:$0xff]
    %v432 = vld [vmem:[#allocation10 + $0x48] sm:$0xff]
    %v433 = vld [vmem:[#allocation10 + $0x50] sm:$0xff]
    %v434 = vld [vmem:[#allocation10 + $0x58] sm:$0xff]
    %v435 = vld [vmem:[#allocation10 + $0x60] sm:$0xff]
    %v436 = vld [vmem:[#allocation10 + $0x68] sm:$0xff]
    %v437 = vld [vmem:[#allocation10 + $0x70] sm:$0xff]
    %v438 = vld [vmem:[#allocation10 + $0x78] sm:$0xff]
    %v439 = vld [vmem:[#allocation10 + $0x80] sm:$0xff]
    %v440 = vld [vmem:[#allocation10 + $0x88] sm:$0xff]
    %v441 = vld [vmem:[#allocation10 + $0x90] sm:$0xff]
    %v442 = vld [vmem:[#allocation10 + $0x98] sm:$0xff]
    %v443 = vld [vmem:[#allocation10 + $0xa0] sm:$0xff]
    %v444 = vld [vmem:[#allocation10 + $0xa8] sm:$0xff]
    %v445 = vld [vmem:[#allocation10 + $0xb0] sm:$0xff]
    %v446 = vld [vmem:[#allocation10 + $0xb8] sm:$0xff]
    %v447 = vld [vmem:[#allocation10 + $0xc0] sm:$0xff]
    %v448 = vld [vmem:[#allocation10 + $0xc8] sm:$0xff]
    %v449 = vld [vmem:[#allocation10 + $0xd0] sm:$0xff]
    %v450 = vld [vmem:[#allocation10 + $0xd8] sm:$0xff]
    %v451 = vld [vmem:[#allocation10 + $0xe0] sm:$0xff]
    %v452 = vld [vmem:[#allocation10 + $0xe8] sm:$0xff]
    %v453 = vld [vmem:[#allocation10 + $0xf0] sm:$0xff]
    %v454 = vld [vmem:[#allocation10 + $0xf8] sm:$0xff]
    %v455 = vld [vmem:[#allocation10 + $0x100] sm:$0xff]
    %v456 = vld [vmem:[#allocation10 + $0x108] sm:$0xff]
    %v457 = vld [vmem:[#allocation10 + $0x110] sm:$0xff]
    %v458 = vld [vmem:[#allocation10 + $0x118] sm:$0xff]
    %v459 = vld [vmem:[#allocation10 + $0x120] sm:$0xff]
    %v460 = vld [vmem:[#allocation10 + $0x128] sm:$0xff]
    %v461 = vld [vmem:[#allocation10 + $0x130] sm:$0xff]
    %v462 = vld [vmem:[#allocation10 + $0x138] sm:$0xff]
    %v463 = vld [vmem:[#allocation10 + $0x140] sm:$0xff]
    %v464 = vld [vmem:[#allocation10 + $0x148] sm:$0xff]
    %v465 = vld [vmem:[#allocation10 + $0x150] sm:$0xff]
    %v466 = vld [vmem:[#allocation10 + $0x158] sm:$0xff]
    %v467 = vld [vmem:[#allocation10 + $0x160] sm:$0xff]
    %v468 = vld [vmem:[#allocation10 + $0x168] sm:$0xff]
    %v469 = vld [vmem:[#allocation10 + $0x170] sm:$0xff]
    %v470 = vld [vmem:[#allocation10 + $0x178] sm:$0xff]
    %v471 = vld [vmem:[#allocation10 + $0x180] sm:$0xff]
    %v472 = vld [vmem:[#allocation10 + $0x188] sm:$0xff]
    %v473 = vld [vmem:[#allocation10 + $0x190] sm:$0xff]
    %v474 = vld [vmem:[#allocation10 + $0x198] sm:$0xff]
    %v475 = vld [vmem:[#allocation10 + $0x1a0] sm:$0xff]
    %v476 = vld [vmem:[#allocation10 + $0x1a8] sm:$0xff]
    %v477 = vld [vmem:[#allocation10 + $0x1b0] sm:$0xff]
    %v478 = vld [vmem:[#allocation10 + $0x1b8] sm:$0xff]
    %v479 = vld [vmem:[#allocation10 + $0x1c0] sm:$0xff]
    %v480 = vld [vmem:[#allocation10 + $0x1c8] sm:$0xff]
    %v481 = vld [vmem:[#allocation10 + $0x1d0] sm:$0xff]
    %v482 = vld [vmem:[#allocation10 + $0x1d8] sm:$0xff]
    %v483 = vld [vmem:[#allocation10 + $0x1e0] sm:$0xff]
    %v484 = vld [vmem:[#allocation10 + $0x1e8] sm:$0xff]
    %v485 = vld [vmem:[#allocation10 + $0x1f0] sm:$0xff]
    %v486 = vld [vmem:[#allocation10 + $0x1f8] sm:$0xff]
    %487 = vmatprep.subr.mxu0 %v484
    %488 = vmatpush1.msra.mxu0 %v483
    %489 = vmatprep.subr.mxu0 %v480
    %490 = vmatpush1.msra.mxu0 %v479
    %491 = vmatprep.subr.mxu0 %v476
    %492 = vmatpush1.msra.mxu0 %v475
    %493 = vmatprep.subr.mxu0 %v472
    %494 = vmatpush1.msra.mxu0 %v471
    %495 = vmatprep.subr.mxu0 %v468
    %496 = vmatpush1.msra.mxu0 %v467
    %497 = vmatprep.subr.mxu0 %v464
    %498 = vmatpush1.msra.mxu0 %v463
    %499 = vmatprep.subr.mxu0 %v460
    %500 = vmatpush1.msra.mxu0 %v459
    %501 = vmatprep.subr.mxu0 %v456
    %502 = vmatpush1.msra.mxu0 %v455
    %503 = vmatprep.subr.mxu0 %v452
    %504 = vmatpush1.msra.mxu0 %v451
    %505 = vmatprep.subr.mxu0 %v448
    %506 = vmatpush1.msra.mxu0 %v447
    %507 = vmatprep.subr.mxu0 %v444
    %508 = vmatpush1.msra.mxu0 %v443
    %509 = vmatprep.subr.mxu0 %v440
    %510 = vmatpush1.msra.mxu0 %v439
    %511 = vmatprep.subr.mxu0 %v436
    %512 = vmatpush1.msra.mxu0 %v435
    %513 = vmatprep.subr.mxu0 %v432
    %514 = vmatpush1.msra.mxu0 %v431
    %515 = vmatprep.subr.mxu0 %v428
    %516 = vmatpush1.msra.mxu0 %v427
    %517 = vmatprep.subr.mxu0 %v424
    %518 = vmatpush1.msra.mxu0 %v423
    %519 = vmatprep.subr.mxu0 0.0
    %520 = vmatpush2.msra.mxu0 0.0
    %521 = vmatprep.subr.mxu0 0.0
    %522 = vmatpush2.msra.mxu0 0.0
    %523 = vmatprep.subr.mxu0 0.0
    %524 = vmatpush2.msra.mxu0 0.0
    %525 = vmatprep.subr.mxu0 0.0
    %526 = vmatpush2.msra.mxu0 0.0
    %527 = vmatprep.subr.mxu0 0.0
    %528 = vmatpush2.msra.mxu0 0.0
    %529 = vmatprep.subr.mxu0 0.0
    %530 = vmatpush2.msra.mxu0 0.0
    %531 = vmatprep.subr.mxu0 0.0
    %532 = vmatpush2.msra.mxu0 0.0
    %533 = vmatprep.subr.mxu0 0.0
    %534 = vmatpush2.msra.mxu0 0.0
    %535 = vmatprep.subr.mxu0 0.0
    %536 = vmatpush2.msra.mxu0 0.0
    %537 = vmatprep.subr.mxu0 0.0
    %538 = vmatpush2.msra.mxu0 0.0
    %539 = vmatprep.subr.mxu0 0.0
    %540 = vmatpush2.msra.mxu0 0.0
    %541 = vmatprep.subr.mxu0 0.0
    %542 = vmatpush2.msra.mxu0 0.0
    %543 = vmatprep.subr.mxu0 0.0
    %544 = vmatpush2.msra.mxu0 0.0
    %545 = vmatprep.subr.mxu0 0.0
    %546 = vmatpush2.msra.mxu0 0.0
    %547 = vmatprep.subr.mxu0 0.0
    %548 = vmatpush2.msra.mxu0 0.0
    %549 = vmatprep.subr.mxu0 0.0
    %550 = vmatpush2.msra.mxu0 0.0
    %551 = vmatprep.mubr.f32.mxu0 0.0
    %552 = vmatmul.mubr.f32.gmra.mxu0 %v417
    %v553 = vpop.f32.mrf.mxu0
    %v554 = vadd.f32 0.0, %v553
    %v555 = vpop.f32.mrf.mxu0
    %v556 = vadd.f32 0.0, %v555
    %557 = vdwg.mxu0
    %558 = vmatprep.subr.mxu0 %v486
    %559 = vmatpush1.msra.mxu0 %v485
    %560 = vmatprep.subr.mxu0 %v482
    %561 = vmatpush1.msra.mxu0 %v481
    %562 = vmatprep.subr.mxu0 %v478
    %563 = vmatpush1.msra.mxu0 %v477
    %564 = vmatprep.subr.mxu0 %v474
    %565 = vmatpush1.msra.mxu0 %v473
    %566 = vmatprep.subr.mxu0 %v470
    %567 = vmatpush1.msra.mxu0 %v469
    %568 = vmatprep.subr.mxu0 %v466
    %569 = vmatpush1.msra.mxu0 %v465
    %570 = vmatprep.subr.mxu0 %v462
    %571 = vmatpush1.msra.mxu0 %v461
    %572 = vmatprep.subr.mxu0 %v458
    %573 = vmatpush1.msra.mxu0 %v457
    %574 = vmatprep.subr.mxu0 %v454
    %575 = vmatpush1.msra.mxu0 %v453
    %576 = vmatprep.subr.mxu0 %v450
    %577 = vmatpush1.msra.mxu0 %v449
    %578 = vmatprep.subr.mxu0 %v446
    %579 = vmatpush1.msra.mxu0 %v445
    %580 = vmatprep.subr.mxu0 %v442
    %581 = vmatpush1.msra.mxu0 %v441
    %582 = vmatprep.subr.mxu0 %v438
    %583 = vmatpush1.msra.mxu0 %v437
    %584 = vmatprep.subr.mxu0 %v434
    %585 = vmatpush1.msra.mxu0 %v433
    %586 = vmatprep.subr.mxu0 %v430
    %587 = vmatpush1.msra.mxu0 %v429
    %588 = vmatprep.subr.mxu0 %v426
    %589 = vmatpush1.msra.mxu0 %v425
    %590 = vmatprep.subr.mxu0 0.0
    %591 = vmatpush2.msra.mxu0 0.0
    %592 = vmatprep.subr.mxu0 0.0
    %593 = vmatpush2.msra.mxu0 0.0
    %594 = vmatprep.subr.mxu0 0.0
    %595 = vmatpush2.msra.mxu0 0.0
    %596 = vmatprep.subr.mxu0 0.0
    %597 = vmatpush2.msra.mxu0 0.0
    %598 = vmatprep.subr.mxu0 0.0
    %599 = vmatpush2.msra.mxu0 0.0
    %600 = vmatprep.subr.mxu0 0.0
    %601 = vmatpush2.msra.mxu0 0.0
    %602 = vmatprep.subr.mxu0 0.0
    %603 = vmatpush2.msra.mxu0 0.0
    %604 = vmatprep.subr.mxu0 0.0
    %605 = vmatpush2.msra.mxu0 0.0
    %606 = vmatprep.subr.mxu0 0.0
    %607 = vmatpush2.msra.mxu0 0.0
    %608 = vmatprep.subr.mxu0 0.0
    %609 = vmatpush2.msra.mxu0 0.0
    %610 = vmatprep.subr.mxu0 0.0
    %611 = vmatpush2.msra.mxu0 0.0
    %612 = vmatprep.subr.mxu0 0.0
    %613 = vmatpush2.msra.mxu0 0.0
    %614 = vmatprep.subr.mxu0 0.0
    %615 = vmatpush2.msra.mxu0 0.0
    %616 = vmatprep.subr.mxu0 0.0
    %617 = vmatpush2.msra.mxu0 0.0
    %618 = vmatprep.subr.mxu0 0.0
    %619 = vmatpush2.msra.mxu0 0.0
    %620 = vmatprep.subr.mxu0 0.0
    %621 = vmatpush2.msra.mxu0 0.0
    %622 = vmatprep.mubr.f32.mxu0 0.0
    %623 = vmatmul.mubr.f32.gmra.mxu0 %v417
    %v624 = vpop.f32.mrf.mxu0
    %v625 = vadd.f32 0.0, %v624
    %v626 = vpop.f32.mrf.mxu0
    %v627 = vadd.f32 0.0, %v626
    %628 = vdwg.mxu0
    %v629 = vadd.f32 %v419, %v554
    %v630 = vadd.f32 %v420, %v556
    %v631 = vadd.f32 %v421, %v625
    %v632 = vadd.f32 %v422, %v627
    %v633 = vxor.u32 %v629, 2147483648
    %v634 = vxor.u32 %v630, 2147483648
    %v635 = vmul.f32 %v633, 1.442695
    %v636 = vpow.pop %v635
    %v637 = vmul.f32 %v634, 1.442695
    %v638 = vpow.pop %v637
    %v639 = vadd.f32 %v636, 1.0
    %v640 = vadd.f32 %v638, 1.0
    %v641 = vrcp.pop %v639
    %v642 = vmul.f32 1.0, %v641
    %v643 = vrcp.pop %v640
    %v644 = vmul.f32 1.0, %v643
    %v645 = vtanh.pop %v631
    %v646 = vxor.u32 %v632, 2147483648
    %v647 = vmul.f32 %v646, 1.442695
    %v648 = vpow.pop %v647
    %v649 = vadd.f32 %v648, 1.0
    %v650 = vrcp.pop %v649
    %v651 = vmul.f32 1.0, %v650
    %v652 = vmul.f32 %v644, %v418
    %v653 = vmul.f32 %v642, %v645
    %v654 = vadd.f32 %v652, %v653
    %v655 = vtanh.pop %v654
    %v656 = vmul.f32 %v651, %v655
    %s657 = scalar_lea.vmem [#allocation2], 32
    %v658 = vld [vmem:[%s657] sm:$0xff]
    %v659 = vld [vmem:[%s657 + $0x8] sm:$0xff]
    %v660 = vld [vmem:[%s657 + $0x10] sm:$0xff]
    %v661 = vld [vmem:[%s657 + $0x18] sm:$0xff]
    %662 = vmatprep.subr.mxu0 %v484
    %663 = vmatpush1.msra.mxu0 %v483
    %664 = vmatprep.subr.mxu0 %v480
    %665 = vmatpush1.msra.mxu0 %v479
    %666 = vmatprep.subr.mxu0 %v476
    %667 = vmatpush1.msra.mxu0 %v475
    %668 = vmatprep.subr.mxu0 %v472
    %669 = vmatpush1.msra.mxu0 %v471
    %670 = vmatprep.subr.mxu0 %v468
    %671 = vmatpush1.msra.mxu0 %v467
    %672 = vmatprep.subr.mxu0 %v464
    %673 = vmatpush1.msra.mxu0 %v463
    %674 = vmatprep.subr.mxu0 %v460
    %675 = vmatpush1.msra.mxu0 %v459
    %676 = vmatprep.subr.mxu0 %v456
    %677 = vmatpush1.msra.mxu0 %v455
    %678 = vmatprep.subr.mxu0 %v452
    %679 = vmatpush1.msra.mxu0 %v451
    %680 = vmatprep.subr.mxu0 %v448
    %681 = vmatpush1.msra.mxu0 %v447
    %682 = vmatprep.subr.mxu0 %v444
    %683 = vmatpush1.msra.mxu0 %v443
    %684 = vmatprep.subr.mxu0 %v440
    %685 = vmatpush1.msra.mxu0 %v439
    %686 = vmatprep.subr.mxu0 %v436
    %687 = vmatpush1.msra.mxu0 %v435
    %688 = vmatprep.subr.mxu0 %v432
    %689 = vmatpush1.msra.mxu0 %v431
    %690 = vmatprep.subr.mxu0 %v428
    %691 = vmatpush1.msra.mxu0 %v427
    %692 = vmatprep.subr.mxu0 %v424
    %693 = vmatpush1.msra.mxu0 %v423
    %694 = vmatprep.subr.mxu0 0.0
    %695 = vmatpush2.msra.mxu0 0.0
    %696 = vmatprep.subr.mxu0 0.0
    %697 = vmatpush2.msra.mxu0 0.0
    %698 = vmatprep.subr.mxu0 0.0
    %699 = vmatpush2.msra.mxu0 0.0
    %700 = vmatprep.subr.mxu0 0.0
    %701 = vmatpush2.msra.mxu0 0.0
    %702 = vmatprep.subr.mxu0 0.0
    %703 = vmatpush2.msra.mxu0 0.0
    %704 = vmatprep.subr.mxu0 0.0
    %705 = vmatpush2.msra.mxu0 0.0
    %706 = vmatprep.subr.mxu0 0.0
    %707 = vmatpush2.msra.mxu0 0.0
    %708 = vmatprep.subr.mxu0 0.0
    %709 = vmatpush2.msra.mxu0 0.0
    %710 = vmatprep.subr.mxu0 0.0
    %711 = vmatpush2.msra.mxu0 0.0
    %712 = vmatprep.subr.mxu0 0.0
    %713 = vmatpush2.msra.mxu0 0.0
    %714 = vmatprep.subr.mxu0 0.0
    %715 = vmatpush2.msra.mxu0 0.0
    %716 = vmatprep.subr.mxu0 0.0
    %717 = vmatpush2.msra.mxu0 0.0
    %718 = vmatprep.subr.mxu0 0.0
    %719 = vmatpush2.msra.mxu0 0.0
    %720 = vmatprep.subr.mxu0 0.0
    %721 = vmatpush2.msra.mxu0 0.0
    %722 = vmatprep.subr.mxu0 0.0
    %723 = vmatpush2.msra.mxu0 0.0
    %724 = vmatprep.subr.mxu0 0.0
    %725 = vmatpush2.msra.mxu0 0.0
    %726 = vmatprep.mubr.f32.mxu0 0.0
    %727 = vmatmul.mubr.f32.gmra.mxu0 %v656
    %v728 = vpop.f32.mrf.mxu0
    %v729 = vadd.f32 0.0, %v728
    %v730 = vpop.f32.mrf.mxu0
    %v731 = vadd.f32 0.0, %v730
    %732 = vdwg.mxu0
    %733 = vmatprep.subr.mxu0 %v486
    %734 = vmatpush1.msra.mxu0 %v485
    %735 = vmatprep.subr.mxu0 %v482
    %736 = vmatpush1.msra.mxu0 %v481
    %737 = vmatprep.subr.mxu0 %v478
    %738 = vmatpush1.msra.mxu0 %v477
    %739 = vmatprep.subr.mxu0 %v474
    %740 = vmatpush1.msra.mxu0 %v473
    %741 = vmatprep.subr.mxu0 %v470
    %742 = vmatpush1.msra.mxu0 %v469
    %743 = vmatprep.subr.mxu0 %v466
    %744 = vmatpush1.msra.mxu0 %v465
    %745 = vmatprep.subr.mxu0 %v462
    %746 = vmatpush1.msra.mxu0 %v461
    %747 = vmatprep.subr.mxu0 %v458
    %748 = vmatpush1.msra.mxu0 %v457
    %749 = vmatprep.subr.mxu0 %v454
    %750 = vmatpush1.msra.mxu0 %v453
    %751 = vmatprep.subr.mxu0 %v450
    %752 = vmatpush1.msra.mxu0 %v449
    %753 = vmatprep.subr.mxu0 %v446
    %754 = vmatpush1.msra.mxu0 %v445
    %755 = vmatprep.subr.mxu0 %v442
    %756 = vmatpush1.msra.mxu0 %v441
    %757 = vmatprep.subr.mxu0 %v438
    %758 = vmatpush1.msra.mxu0 %v437
    %759 = vmatprep.subr.mxu0 %v434
    %760 = vmatpush1.msra.mxu0 %v433
    %761 = vmatprep.subr.mxu0 %v430
    %762 = vmatpush1.msra.mxu0 %v429
    %763 = vmatprep.subr.mxu0 %v426
    %764 = vmatpush1.msra.mxu0 %v425
    %765 = vmatprep.subr.mxu0 0.0
    %766 = vmatpush2.msra.mxu0 0.0
    %767 = vmatprep.subr.mxu0 0.0
    %768 = vmatpush2.msra.mxu0 0.0
    %769 = vmatprep.subr.mxu0 0.0
    %770 = vmatpush2.msra.mxu0 0.0
    %771 = vmatprep.subr.mxu0 0.0
    %772 = vmatpush2.msra.mxu0 0.0
    %773 = vmatprep.subr.mxu0 0.0
    %774 = vmatpush2.msra.mxu0 0.0
    %775 = vmatprep.subr.mxu0 0.0
    %776 = vmatpush2.msra.mxu0 0.0
    %777 = vmatprep.subr.mxu0 0.0
    %778 = vmatpush2.msra.mxu0 0.0
    %779 = vmatprep.subr.mxu0 0.0
    %780 = vmatpush2.msra.mxu0 0.0
    %781 = vmatprep.subr.mxu0 0.0
    %782 = vmatpush2.msra.mxu0 0.0
    %783 = vmatprep.subr.mxu0 0.0
    %784 = vmatpush2.msra.mxu0 0.0
    %785 = vmatprep.subr.mxu0 0.0
    %786 = vmatpush2.msra.mxu0 0.0
    %787 = vmatprep.subr.mxu0 0.0
    %788 = vmatpush2.msra.mxu0 0.0
    %789 = vmatprep.subr.mxu0 0.0
    %790 = vmatpush2.msra.mxu0 0.0
    %791 = vmatprep.subr.mxu0 0.0
    %792 = vmatpush2.msra.mxu0 0.0
    %793 = vmatprep.subr.mxu0 0.0
    %794 = vmatpush2.msra.mxu0 0.0
    %795 = vmatprep.subr.mxu0 0.0
    %796 = vmatpush2.msra.mxu0 0.0
    %797 = vmatprep.mubr.f32.mxu0 0.0
    %798 = vmatmul.mubr.f32.gmra.mxu0 %v656
    %v799 = vpop.f32.mrf.mxu0
    %v800 = vadd.f32 0.0, %v799
    %v801 = vpop.f32.mrf.mxu0
    %v802 = vadd.f32 0.0, %v801
    %803 = vdwg.mxu0
    %v804 = vadd.f32 %v658, %v729
    %v805 = vadd.f32 %v659, %v731
    %v806 = vadd.f32 %v660, %v800
    %v807 = vadd.f32 %v661, %v802
    %v808 = vxor.u32 %v804, 2147483648
    %v809 = vxor.u32 %v805, 2147483648
    %v810 = vmul.f32 %v808, 1.442695
    %v811 = vpow.pop %v810
    %v812 = vmul.f32 %v809, 1.442695
    %v813 = vpow.pop %v812
    %v814 = vadd.f32 %v811, 1.0
    %v815 = vadd.f32 %v813, 1.0
    %v816 = vrcp.pop %v814
    %v817 = vmul.f32 1.0, %v816
    %v818 = vrcp.pop %v815
    %v819 = vmul.f32 1.0, %v818
    %v820 = vtanh.pop %v806
    %v821 = vxor.u32 %v807, 2147483648
    %v822 = vmul.f32 %v821, 1.442695
    %v823 = vpow.pop %v822
    %v824 = vadd.f32 %v823, 1.0
    %v825 = vrcp.pop %v824
    %v826 = vmul.f32 1.0, %v825
    %v827 = vmul.f32 %v819, %v654
    %v828 = vmul.f32 %v817, %v820
    %v829 = vadd.f32 %v827, %v828
    %v830 = vtanh.pop %v829
    %v831 = vmul.f32 %v826, %v830
    %s832 = scalar_lea.vmem [#allocation2], 64
    %v833 = vld [vmem:[%s832] sm:$0xff]
    %v834 = vld [vmem:[%s832 + $0x8] sm:$0xff]
    %v835 = vld [vmem:[%s832 + $0x10] sm:$0xff]
    %v836 = vld [vmem:[%s832 + $0x18] sm:$0xff]
    %837 = vmatprep.subr.mxu0 %v484
    %838 = vmatpush1.msra.mxu0 %v483
    %839 = vmatprep.subr.mxu0 %v480
    %840 = vmatpush1.msra.mxu0 %v479
    %841 = vmatprep.subr.mxu0 %v476
    %842 = vmatpush1.msra.mxu0 %v475
    %843 = vmatprep.subr.mxu0 %v472
    %844 = vmatpush1.msra.mxu0 %v471
    %845 = vmatprep.subr.mxu0 %v468
    %846 = vmatpush1.msra.mxu0 %v467
    %847 = vmatprep.subr.mxu0 %v464
    %848 = vmatpush1.msra.mxu0 %v463
    %849 = vmatprep.subr.mxu0 %v460
    %850 = vmatpush1.msra.mxu0 %v459
    %851 = vmatprep.subr.mxu0 %v456
    %852 = vmatpush1.msra.mxu0 %v455
    %853 = vmatprep.subr.mxu0 %v452
    %854 = vmatpush1.msra.mxu0 %v451
    %855 = vmatprep.subr.mxu0 %v448
    %856 = vmatpush1.msra.mxu0 %v447
    %857 = vmatprep.subr.mxu0 %v444
    %858 = vmatpush1.msra.mxu0 %v443
    %859 = vmatprep.subr.mxu0 %v440
    %860 = vmatpush1.msra.mxu0 %v439
    %861 = vmatprep.subr.mxu0 %v436
    %862 = vmatpush1.msra.mxu0 %v435
    %863 = vmatprep.subr.mxu0 %v432
    %864 = vmatpush1.msra.mxu0 %v431
    %865 = vmatprep.subr.mxu0 %v428
    %866 = vmatpush1.msra.mxu0 %v427
    %867 = vmatprep.subr.mxu0 %v424
    %868 = vmatpush1.msra.mxu0 %v423
    %869 = vmatprep.subr.mxu0 0.0
    %870 = vmatpush2.msra.mxu0 0.0
    %871 = vmatprep.subr.mxu0 0.0
    %872 = vmatpush2.msra.mxu0 0.0
    %873 = vmatprep.subr.mxu0 0.0
    %874 = vmatpush2.msra.mxu0 0.0
    %875 = vmatprep.subr.mxu0 0.0
    %876 = vmatpush2.msra.mxu0 0.0
    %877 = vmatprep.subr.mxu0 0.0
    %878 = vmatpush2.msra.mxu0 0.0
    %879 = vmatprep.subr.mxu0 0.0
    %880 = vmatpush2.msra.mxu0 0.0
    %881 = vmatprep.subr.mxu0 0.0
    %882 = vmatpush2.msra.mxu0 0.0
    %883 = vmatprep.subr.mxu0 0.0
    %884 = vmatpush2.msra.mxu0 0.0
    %885 = vmatprep.subr.mxu0 0.0
    %886 = vmatpush2.msra.mxu0 0.0
    %887 = vmatprep.subr.mxu0 0.0
    %888 = vmatpush2.msra.mxu0 0.0
    %889 = vmatprep.subr.mxu0 0.0
    %890 = vmatpush2.msra.mxu0 0.0
    %891 = vmatprep.subr.mxu0 0.0
    %892 = vmatpush2.msra.mxu0 0.0
    %893 = vmatprep.subr.mxu0 0.0
    %894 = vmatpush2.msra.mxu0 0.0
    %895 = vmatprep.subr.mxu0 0.0
    %896 = vmatpush2.msra.mxu0 0.0
    %897 = vmatprep.subr.mxu0 0.0
    %898 = vmatpush2.msra.mxu0 0.0
    %899 = vmatprep.subr.mxu0 0.0
    %900 = vmatpush2.msra.mxu0 0.0
    %901 = vmatprep.mubr.f32.mxu0 0.0
    %902 = vmatmul.mubr.f32.gmra.mxu0 %v831
    %v903 = vpop.f32.mrf.mxu0
    %v904 = vadd.f32 0.0, %v903
    %v905 = vpop.f32.mrf.mxu0
    %v906 = vadd.f32 0.0, %v905
    %907 = vdwg.mxu0
    %908 = vmatprep.subr.mxu0 %v486
    %909 = vmatpush1.msra.mxu0 %v485
    %910 = vmatprep.subr.mxu0 %v482
    %911 = vmatpush1.msra.mxu0 %v481
    %912 = vmatprep.subr.mxu0 %v478
    %913 = vmatpush1.msra.mxu0 %v477
    %914 = vmatprep.subr.mxu0 %v474
    %915 = vmatpush1.msra.mxu0 %v473
    %916 = vmatprep.subr.mxu0 %v470
    %917 = vmatpush1.msra.mxu0 %v469
    %918 = vmatprep.subr.mxu0 %v466
    %919 = vmatpush1.msra.mxu0 %v465
    %920 = vmatprep.subr.mxu0 %v462
    %921 = vmatpush1.msra.mxu0 %v461
    %922 = vmatprep.subr.mxu0 %v458
    %923 = vmatpush1.msra.mxu0 %v457
    %924 = vmatprep.subr.mxu0 %v454
    %925 = vmatpush1.msra.mxu0 %v453
    %926 = vmatprep.subr.mxu0 %v450
    %927 = vmatpush1.msra.mxu0 %v449
    %928 = vmatprep.subr.mxu0 %v446
    %929 = vmatpush1.msra.mxu0 %v445
    %930 = vmatprep.subr.mxu0 %v442
    %931 = vmatpush1.msra.mxu0 %v441
    %932 = vmatprep.subr.mxu0 %v438
    %933 = vmatpush1.msra.mxu0 %v437
    %934 = vmatprep.subr.mxu0 %v434
    %935 = vmatpush1.msra.mxu0 %v433
    %936 = vmatprep.subr.mxu0 %v430
    %937 = vmatpush1.msra.mxu0 %v429
    %938 = vmatprep.subr.mxu0 %v426
    %939 = vmatpush1.msra.mxu0 %v425
    %940 = vmatprep.subr.mxu0 0.0
    %941 = vmatpush2.msra.mxu0 0.0
    %942 = vmatprep.subr.mxu0 0.0
    %943 = vmatpush2.msra.mxu0 0.0
    %944 = vmatprep.subr.mxu0 0.0
    %945 = vmatpush2.msra.mxu0 0.0
    %946 = vmatprep.subr.mxu0 0.0
    %947 = vmatpush2.msra.mxu0 0.0
    %948 = vmatprep.subr.mxu0 0.0
    %949 = vmatpush2.msra.mxu0 0.0
    %950 = vmatprep.subr.mxu0 0.0
    %951 = vmatpush2.msra.mxu0 0.0
    %952 = vmatprep.subr.mxu0 0.0
    %953 = vmatpush2.msra.mxu0 0.0
    %954 = vmatprep.subr.mxu0 0.0
    %955 = vmatpush2.msra.mxu0 0.0
    %956 = vmatprep.subr.mxu0 0.0
    %957 = vmatpush2.msra.mxu0 0.0
    %958 = vmatprep.subr.mxu0 0.0
    %959 = vmatpush2.msra.mxu0 0.0
    %960 = vmatprep.subr.mxu0 0.0
    %961 = vmatpush2.msra.mxu0 0.0
    %962 = vmatprep.subr.mxu0 0.0
    %963 = vmatpush2.msra.mxu0 0.0
    %964 = vmatprep.subr.mxu0 0.0
    %965 = vmatpush2.msra.mxu0 0.0
    %966 = vmatprep.subr.mxu0 0.0
    %967 = vmatpush2.msra.mxu0 0.0
    %968 = vmatprep.subr.mxu0 0.0
    %969 = vmatpush2.msra.mxu0 0.0
    %970 = vmatprep.subr.mxu0 0.0
    %971 = vmatpush2.msra.mxu0 0.0
    %972 = vmatprep.mubr.f32.mxu0 0.0
    %973 = vmatmul.mubr.f32.gmra.mxu0 %v831
    %v974 = vpop.f32.mrf.mxu0
    %v975 = vadd.f32 0.0, %v974
    %v976 = vpop.f32.mrf.mxu0
    %v977 = vadd.f32 0.0, %v976
    %978 = vdwg.mxu0
    %v979 = vadd.f32 %v833, %v904
    %v980 = vadd.f32 %v834, %v906
    %v981 = vadd.f32 %v835, %v975
    %v982 = vadd.f32 %v836, %v977
    %v983 = vxor.u32 %v979, 2147483648
    %v984 = vxor.u32 %v980, 2147483648
    %v985 = vmul.f32 %v983, 1.442695
    %v986 = vpow.pop %v985
    %v987 = vmul.f32 %v984, 1.442695
    %v988 = vpow.pop %v987
    %v989 = vadd.f32 %v986, 1.0
    %v990 = vadd.f32 %v988, 1.0
    %v991 = vrcp.pop %v989
    %v992 = vmul.f32 1.0, %v991
    %v993 = vrcp.pop %v990
    %v994 = vmul.f32 1.0, %v993
    %v995 = vtanh.pop %v981
    %v996 = vxor.u32 %v982, 2147483648
    %v997 = vmul.f32 %v996, 1.442695
    %v998 = vpow.pop %v997
    %v999 = vadd.f32 %v998, 1.0
    %v1000 = vrcp.pop %v999
    %v1001 = vmul.f32 1.0, %v1000
    %v1002 = vmul.f32 %v994, %v829
    %v1003 = vmul.f32 %v992, %v995
    %v1004 = vadd.f32 %v1002, %v1003
    %v1005 = vtanh.pop %v1004
    %v1006 = vmul.f32 %v1001, %v1005
    %s1007 = scalar_lea.vmem [#allocation2], 96
    %v1008 = vld [vmem:[%s1007] sm:$0xff]
    %v1009 = vld [vmem:[%s1007 + $0x8] sm:$0xff]
    %v1010 = vld [vmem:[%s1007 + $0x10] sm:$0xff]
    %v1011 = vld [vmem:[%s1007 + $0x18] sm:$0xff]
    %1012 = vmatprep.subr.mxu0 %v484
    %1013 = vmatpush1.msra.mxu0 %v483
    %1014 = vmatprep.subr.mxu0 %v480
    %1015 = vmatpush1.msra.mxu0 %v479
    %1016 = vmatprep.subr.mxu0 %v476
    %1017 = vmatpush1.msra.mxu0 %v475
    %1018 = vmatprep.subr.mxu0 %v472
    %1019 = vmatpush1.msra.mxu0 %v471
    %1020 = vmatprep.subr.mxu0 %v468
    %1021 = vmatpush1.msra.mxu0 %v467
    %1022 = vmatprep.subr.mxu0 %v464
    %1023 = vmatpush1.msra.mxu0 %v463
    %1024 = vmatprep.subr.mxu0 %v460
    %1025 = vmatpush1.msra.mxu0 %v459
    %1026 = vmatprep.subr.mxu0 %v456
    %1027 = vmatpush1.msra.mxu0 %v455
    %1028 = vmatprep.subr.mxu0 %v452
    %1029 = vmatpush1.msra.mxu0 %v451
    %1030 = vmatprep.subr.mxu0 %v448
    %1031 = vmatpush1.msra.mxu0 %v447
    %1032 = vmatprep.subr.mxu0 %v444
    %1033 = vmatpush1.msra.mxu0 %v443
    %1034 = vmatprep.subr.mxu0 %v440
    %1035 = vmatpush1.msra.mxu0 %v439
    %1036 = vmatprep.subr.mxu0 %v436
    %1037 = vmatpush1.msra.mxu0 %v435
    %1038 = vmatprep.subr.mxu0 %v432
    %1039 = vmatpush1.msra.mxu0 %v431
    %1040 = vmatprep.subr.mxu0 %v428
    %1041 = vmatpush1.msra.mxu0 %v427
    %1042 = vmatprep.subr.mxu0 %v424
    %1043 = vmatpush1.msra.mxu0 %v423
    %1044 = vmatprep.subr.mxu0 0.0
    %1045 = vmatpush2.msra.mxu0 0.0
    %1046 = vmatprep.subr.mxu0 0.0
    %1047 = vmatpush2.msra.mxu0 0.0
    %1048 = vmatprep.subr.mxu0 0.0
    %1049 = vmatpush2.msra.mxu0 0.0
    %1050 = vmatprep.subr.mxu0 0.0
    %1051 = vmatpush2.msra.mxu0 0.0
    %1052 = vmatprep.subr.mxu0 0.0
    %1053 = vmatpush2.msra.mxu0 0.0
    %1054 = vmatprep.subr.mxu0 0.0
    %1055 = vmatpush2.msra.mxu0 0.0
    %1056 = vmatprep.subr.mxu0 0.0
    %1057 = vmatpush2.msra.mxu0 0.0
    %1058 = vmatprep.subr.mxu0 0.0
    %1059 = vmatpush2.msra.mxu0 0.0
    %1060 = vmatprep.subr.mxu0 0.0
    %1061 = vmatpush2.msra.mxu0 0.0
    %1062 = vmatprep.subr.mxu0 0.0
    %1063 = vmatpush2.msra.mxu0 0.0
    %1064 = vmatprep.subr.mxu0 0.0
    %1065 = vmatpush2.msra.mxu0 0.0
    %1066 = vmatprep.subr.mxu0 0.0
    %1067 = vmatpush2.msra.mxu0 0.0
    %1068 = vmatprep.subr.mxu0 0.0
    %1069 = vmatpush2.msra.mxu0 0.0
    %1070 = vmatprep.subr.mxu0 0.0
    %1071 = vmatpush2.msra.mxu0 0.0
    %1072 = vmatprep.subr.mxu0 0.0
    %1073 = vmatpush2.msra.mxu0 0.0
    %1074 = vmatprep.subr.mxu0 0.0
    %1075 = vmatpush2.msra.mxu0 0.0
    %1076 = vmatprep.mubr.f32.mxu0 0.0
    %1077 = vmatmul.mubr.f32.gmra.mxu0 %v1006
    %v1078 = vpop.f32.mrf.mxu0
    %v1079 = vadd.f32 0.0, %v1078
    %v1080 = vpop.f32.mrf.mxu0
    %v1081 = vadd.f32 0.0, %v1080
    %1082 = vdwg.mxu0
    %1083 = vmatprep.subr.mxu0 %v486
    %1084 = vmatpush1.msra.mxu0 %v485
    %1085 = vmatprep.subr.mxu0 %v482
    %1086 = vmatpush1.msra.mxu0 %v481
    %1087 = vmatprep.subr.mxu0 %v478
    %1088 = vmatpush1.msra.mxu0 %v477
    %1089 = vmatprep.subr.mxu0 %v474
    %1090 = vmatpush1.msra.mxu0 %v473
    %1091 = vmatprep.subr.mxu0 %v470
    %1092 = vmatpush1.msra.mxu0 %v469
    %1093 = vmatprep.subr.mxu0 %v466
    %1094 = vmatpush1.msra.mxu0 %v465
    %1095 = vmatprep.subr.mxu0 %v462
    %1096 = vmatpush1.msra.mxu0 %v461
    %1097 = vmatprep.subr.mxu0 %v458
    %1098 = vmatpush1.msra.mxu0 %v457
    %1099 = vmatprep.subr.mxu0 %v454
    %1100 = vmatpush1.msra.mxu0 %v453
    %1101 = vmatprep.subr.mxu0 %v450
    %1102 = vmatpush1.msra.mxu0 %v449
    %1103 = vmatprep.subr.mxu0 %v446
    %1104 = vmatpush1.msra.mxu0 %v445
    %1105 = vmatprep.subr.mxu0 %v442
    %1106 = vmatpush1.msra.mxu0 %v441
    %1107 = vmatprep.subr.mxu0 %v438
    %1108 = vmatpush1.msra.mxu0 %v437
    %1109 = vmatprep.subr.mxu0 %v434
    %1110 = vmatpush1.msra.mxu0 %v433
    %1111 = vmatprep.subr.mxu0 %v430
    %1112 = vmatpush1.msra.mxu0 %v429
    %1113 = vmatprep.subr.mxu0 %v426
    %1114 = vmatpush1.msra.mxu0 %v425
    %1115 = vmatprep.subr.mxu0 0.0
    %1116 = vmatpush2.msra.mxu0 0.0
    %1117 = vmatprep.subr.mxu0 0.0
    %1118 = vmatpush2.msra.mxu0 0.0
    %1119 = vmatprep.subr.mxu0 0.0
    %1120 = vmatpush2.msra.mxu0 0.0
    %1121 = vmatprep.subr.mxu0 0.0
    %1122 = vmatpush2.msra.mxu0 0.0
    %1123 = vmatprep.subr.mxu0 0.0
    %1124 = vmatpush2.msra.mxu0 0.0
    %1125 = vmatprep.subr.mxu0 0.0
    %1126 = vmatpush2.msra.mxu0 0.0
    %1127 = vmatprep.subr.mxu0 0.0
    %1128 = vmatpush2.msra.mxu0 0.0
    %1129 = vmatprep.subr.mxu0 0.0
    %1130 = vmatpush2.msra.mxu0 0.0
    %1131 = vmatprep.subr.mxu0 0.0
    %1132 = vmatpush2.msra.mxu0 0.0
    %1133 = vmatprep.subr.mxu0 0.0
    %1134 = vmatpush2.msra.mxu0 0.0
    %1135 = vmatprep.subr.mxu0 0.0
    %1136 = vmatpush2.msra.mxu0 0.0
    %1137 = vmatprep.subr.mxu0 0.0
    %1138 = vmatpush2.msra.mxu0 0.0
    %1139 = vmatprep.subr.mxu0 0.0
    %1140 = vmatpush2.msra.mxu0 0.0
    %1141 = vmatprep.subr.mxu0 0.0
    %1142 = vmatpush2.msra.mxu0 0.0
    %1143 = vmatprep.subr.mxu0 0.0
    %1144 = vmatpush2.msra.mxu0 0.0
    %1145 = vmatprep.subr.mxu0 0.0
    %1146 = vmatpush2.msra.mxu0 0.0
    %1147 = vmatprep.mubr.f32.mxu0 0.0
    %1148 = vmatmul.mubr.f32.gmra.mxu0 %v1006
    %v1149 = vpop.f32.mrf.mxu0
    %v1150 = vadd.f32 0.0, %v1149
    %v1151 = vpop.f32.mrf.mxu0
    %v1152 = vadd.f32 0.0, %v1151
    %1153 = vdwg.mxu0
    %v1154 = vadd.f32 %v1008, %v1079
    %v1155 = vadd.f32 %v1009, %v1081
    %v1156 = vadd.f32 %v1010, %v1150
    %v1157 = vadd.f32 %v1011, %v1152
    %v1158 = vxor.u32 %v1154, 2147483648
    %v1159 = vxor.u32 %v1155, 2147483648
    %v1160 = vmul.f32 %v1158, 1.442695
    %v1161 = vpow.pop %v1160
    %v1162 = vmul.f32 %v1159, 1.442695
    %v1163 = vpow.pop %v1162
    %v1164 = vadd.f32 %v1161, 1.0
    %v1165 = vadd.f32 %v1163, 1.0
    %v1166 = vrcp.pop %v1164
    %v1167 = vmul.f32 1.0, %v1166
    %v1168 = vrcp.pop %v1165
    %v1169 = vmul.f32 1.0, %v1168
    %v1170 = vtanh.pop %v1156
    %v1171 = vxor.u32 %v1157, 2147483648
    %v1172 = vmul.f32 %v1171, 1.442695
    %v1173 = vpow.pop %v1172
    %v1174 = vadd.f32 %v1173, 1.0
    %v1175 = vrcp.pop %v1174
    %v1176 = vmul.f32 1.0, %v1175
    %v1177 = vmul.f32 %v1169, %v1004
    %v1178 = vmul.f32 %v1167, %v1170
    %v1179 = vadd.f32 %v1177, %v1178
    %v1180 = vtanh.pop %v1179
    %v1181 = vmul.f32 %v1176, %v1180
    %s1182 = scalar_lea.vmem [#allocation2], 128
    %v1183 = vld [vmem:[%s1182] sm:$0xff]
    %v1184 = vld [vmem:[%s1182 + $0x8] sm:$0xff]
    %v1185 = vld [vmem:[%s1182 + $0x10] sm:$0xff]
    %v1186 = vld [vmem:[%s1182 + $0x18] sm:$0xff]
    %1187 = vmatprep.subr.mxu0 %v484
    %1188 = vmatpush1.msra.mxu0 %v483
    %1189 = vmatprep.subr.mxu0 %v480
    %1190 = vmatpush1.msra.mxu0 %v479
    %1191 = vmatprep.subr.mxu0 %v476
    %1192 = vmatpush1.msra.mxu0 %v475
    %1193 = vmatprep.subr.mxu0 %v472
    %1194 = vmatpush1.msra.mxu0 %v471
    %1195 = vmatprep.subr.mxu0 %v468
    %1196 = vmatpush1.msra.mxu0 %v467
    %1197 = vmatprep.subr.mxu0 %v464
    %1198 = vmatpush1.msra.mxu0 %v463
    %1199 = vmatprep.subr.mxu0 %v460
    %1200 = vmatpush1.msra.mxu0 %v459
    %1201 = vmatprep.subr.mxu0 %v456
    %1202 = vmatpush1.msra.mxu0 %v455
    %1203 = vmatprep.subr.mxu0 %v452
    %1204 = vmatpush1.msra.mxu0 %v451
    %1205 = vmatprep.subr.mxu0 %v448
    %1206 = vmatpush1.msra.mxu0 %v447
    %1207 = vmatprep.subr.mxu0 %v444
    %1208 = vmatpush1.msra.mxu0 %v443
    %1209 = vmatprep.subr.mxu0 %v440
    %1210 = vmatpush1.msra.mxu0 %v439
    %1211 = vmatprep.subr.mxu0 %v436
    %1212 = vmatpush1.msra.mxu0 %v435
    %1213 = vmatprep.subr.mxu0 %v432
    %1214 = vmatpush1.msra.mxu0 %v431
    %1215 = vmatprep.subr.mxu0 %v428
    %1216 = vmatpush1.msra.mxu0 %v427
    %1217 = vmatprep.subr.mxu0 %v424
    %1218 = vmatpush1.msra.mxu0 %v423
    %1219 = vmatprep.subr.mxu0 0.0
    %1220 = vmatpush2.msra.mxu0 0.0
    %1221 = vmatprep.subr.mxu0 0.0
    %1222 = vmatpush2.msra.mxu0 0.0
    %1223 = vmatprep.subr.mxu0 0.0
    %1224 = vmatpush2.msra.mxu0 0.0
    %1225 = vmatprep.subr.mxu0 0.0
    %1226 = vmatpush2.msra.mxu0 0.0
    %1227 = vmatprep.subr.mxu0 0.0
    %1228 = vmatpush2.msra.mxu0 0.0
    %1229 = vmatprep.subr.mxu0 0.0
    %1230 = vmatpush2.msra.mxu0 0.0
    %1231 = vmatprep.subr.mxu0 0.0
    %1232 = vmatpush2.msra.mxu0 0.0
    %1233 = vmatprep.subr.mxu0 0.0
    %1234 = vmatpush2.msra.mxu0 0.0
    %1235 = vmatprep.subr.mxu0 0.0
    %1236 = vmatpush2.msra.mxu0 0.0
    %1237 = vmatprep.subr.mxu0 0.0
    %1238 = vmatpush2.msra.mxu0 0.0
    %1239 = vmatprep.subr.mxu0 0.0
    %1240 = vmatpush2.msra.mxu0 0.0
    %1241 = vmatprep.subr.mxu0 0.0
    %1242 = vmatpush2.msra.mxu0 0.0
    %1243 = vmatprep.subr.mxu0 0.0
    %1244 = vmatpush2.msra.mxu0 0.0
    %1245 = vmatprep.subr.mxu0 0.0
    %1246 = vmatpush2.msra.mxu0 0.0
    %1247 = vmatprep.subr.mxu0 0.0
    %1248 = vmatpush2.msra.mxu0 0.0
    %1249 = vmatprep.subr.mxu0 0.0
    %1250 = vmatpush2.msra.mxu0 0.0
    %1251 = vmatprep.mubr.f32.mxu0 0.0
    %1252 = vmatmul.mubr.f32.gmra.mxu0 %v1181
    %v1253 = vpop.f32.mrf.mxu0
    %v1254 = vadd.f32 0.0, %v1253
    %v1255 = vpop.f32.mrf.mxu0
    %v1256 = vadd.f32 0.0, %v1255
    %1257 = vdwg.mxu0
    %1258 = vmatprep.subr.mxu0 %v486
    %1259 = vmatpush1.msra.mxu0 %v485
    %1260 = vmatprep.subr.mxu0 %v482
    %1261 = vmatpush1.msra.mxu0 %v481
    %1262 = vmatprep.subr.mxu0 %v478
    %1263 = vmatpush1.msra.mxu0 %v477
    %1264 = vmatprep.subr.mxu0 %v474
    %1265 = vmatpush1.msra.mxu0 %v473
    %1266 = vmatprep.subr.mxu0 %v470
    %1267 = vmatpush1.msra.mxu0 %v469
    %1268 = vmatprep.subr.mxu0 %v466
    %1269 = vmatpush1.msra.mxu0 %v465
    %1270 = vmatprep.subr.mxu0 %v462
    %1271 = vmatpush1.msra.mxu0 %v461
    %1272 = vmatprep.subr.mxu0 %v458
    %1273 = vmatpush1.msra.mxu0 %v457
    %1274 = vmatprep.subr.mxu0 %v454
    %1275 = vmatpush1.msra.mxu0 %v453
    %1276 = vmatprep.subr.mxu0 %v450
    %1277 = vmatpush1.msra.mxu0 %v449
    %1278 = vmatprep.subr.mxu0 %v446
    %1279 = vmatpush1.msra.mxu0 %v445
    %1280 = vmatprep.subr.mxu0 %v442
    %1281 = vmatpush1.msra.mxu0 %v441
    %1282 = vmatprep.subr.mxu0 %v438
    %1283 = vmatpush1.msra.mxu0 %v437
    %1284 = vmatprep.subr.mxu0 %v434
    %1285 = vmatpush1.msra.mxu0 %v433
    %1286 = vmatprep.subr.mxu0 %v430
    %1287 = vmatpush1.msra.mxu0 %v429
    %1288 = vmatprep.subr.mxu0 %v426
    %1289 = vmatpush1.msra.mxu0 %v425
    %1290 = vmatprep.subr.mxu0 0.0
    %1291 = vmatpush2.msra.mxu0 0.0
    %1292 = vmatprep.subr.mxu0 0.0
    %1293 = vmatpush2.msra.mxu0 0.0
    %1294 = vmatprep.subr.mxu0 0.0
    %1295 = vmatpush2.msra.mxu0 0.0
    %1296 = vmatprep.subr.mxu0 0.0
    %1297 = vmatpush2.msra.mxu0 0.0
    %1298 = vmatprep.subr.mxu0 0.0
    %1299 = vmatpush2.msra.mxu0 0.0
    %1300 = vmatprep.subr.mxu0 0.0
    %1301 = vmatpush2.msra.mxu0 0.0
    %1302 = vmatprep.subr.mxu0 0.0
    %1303 = vmatpush2.msra.mxu0 0.0
    %1304 = vmatprep.subr.mxu0 0.0
    %1305 = vmatpush2.msra.mxu0 0.0
    %1306 = vmatprep.subr.mxu0 0.0
    %1307 = vmatpush2.msra.mxu0 0.0
    %1308 = vmatprep.subr.mxu0 0.0
    %1309 = vmatpush2.msra.mxu0 0.0
    %1310 = vmatprep.subr.mxu0 0.0
    %1311 = vmatpush2.msra.mxu0 0.0
    %1312 = vmatprep.subr.mxu0 0.0
    %1313 = vmatpush2.msra.mxu0 0.0
    %1314 = vmatprep.subr.mxu0 0.0
    %1315 = vmatpush2.msra.mxu0 0.0
    %1316 = vmatprep.subr.mxu0 0.0
    %1317 = vmatpush2.msra.mxu0 0.0
    %1318 = vmatprep.subr.mxu0 0.0
    %1319 = vmatpush2.msra.mxu0 0.0
    %1320 = vmatprep.subr.mxu0 0.0
    %1321 = vmatpush2.msra.mxu0 0.0
    %1322 = vmatprep.mubr.f32.mxu0 0.0
    %1323 = vmatmul.mubr.f32.gmra.mxu0 %v1181
    %v1324 = vpop.f32.mrf.mxu0
    %v1325 = vadd.f32 0.0, %v1324
    %v1326 = vpop.f32.mrf.mxu0
    %v1327 = vadd.f32 0.0, %v1326
    %1328 = vdwg.mxu0
    %v1329 = vadd.f32 %v1183, %v1254
    %v1330 = vadd.f32 %v1184, %v1256
    %v1331 = vadd.f32 %v1185, %v1325
    %v1332 = vadd.f32 %v1186, %v1327
    %v1333 = vxor.u32 %v1329, 2147483648
    %v1334 = vxor.u32 %v1330, 2147483648
    %v1335 = vmul.f32 %v1333, 1.442695
    %v1336 = vpow.pop %v1335
    %v1337 = vmul.f32 %v1334, 1.442695
    %v1338 = vpow.pop %v1337
    %v1339 = vadd.f32 %v1336, 1.0
    %v1340 = vadd.f32 %v1338, 1.0
    %v1341 = vrcp.pop %v1339
    %v1342 = vmul.f32 1.0, %v1341
    %v1343 = vrcp.pop %v1340
    %v1344 = vmul.f32 1.0, %v1343
    %v1345 = vtanh.pop %v1331
    %v1346 = vxor.u32 %v1332, 2147483648
    %v1347 = vmul.f32 %v1346, 1.442695
    %v1348 = vpow.pop %v1347
    %v1349 = vadd.f32 %v1348, 1.0
    %v1350 = vrcp.pop %v1349
    %v1351 = vmul.f32 1.0, %v1350
    %v1352 = vmul.f32 %v1344, %v1179
    %v1353 = vmul.f32 %v1342, %v1345
    %v1354 = vadd.f32 %v1352, %v1353
    %v1355 = vtanh.pop %v1354
    %v1356 = vmul.f32 %v1351, %v1355
    %s1357 = scalar_lea.vmem [#allocation2], 160
    %v1358 = vld [vmem:[%s1357] sm:$0xff]
    %v1359 = vld [vmem:[%s1357 + $0x8] sm:$0xff]
    %v1360 = vld [vmem:[%s1357 + $0x10] sm:$0xff]
    %v1361 = vld [vmem:[%s1357 + $0x18] sm:$0xff]
    %1362 = vmatprep.subr.mxu0 %v484
    %1363 = vmatpush1.msra.mxu0 %v483
    %1364 = vmatprep.subr.mxu0 %v480
    %1365 = vmatpush1.msra.mxu0 %v479
    %1366 = vmatprep.subr.mxu0 %v476
    %1367 = vmatpush1.msra.mxu0 %v475
    %1368 = vmatprep.subr.mxu0 %v472
    %1369 = vmatpush1.msra.mxu0 %v471
    %1370 = vmatprep.subr.mxu0 %v468
    %1371 = vmatpush1.msra.mxu0 %v467
    %1372 = vmatprep.subr.mxu0 %v464
    %1373 = vmatpush1.msra.mxu0 %v463
    %1374 = vmatprep.subr.mxu0 %v460
    %1375 = vmatpush1.msra.mxu0 %v459
    %1376 = vmatprep.subr.mxu0 %v456
    %1377 = vmatpush1.msra.mxu0 %v455
    %1378 = vmatprep.subr.mxu0 %v452
    %1379 = vmatpush1.msra.mxu0 %v451
    %1380 = vmatprep.subr.mxu0 %v448
    %1381 = vmatpush1.msra.mxu0 %v447
    %1382 = vmatprep.subr.mxu0 %v444
    %1383 = vmatpush1.msra.mxu0 %v443
    %1384 = vmatprep.subr.mxu0 %v440
    %1385 = vmatpush1.msra.mxu0 %v439
    %1386 = vmatprep.subr.mxu0 %v436
    %1387 = vmatpush1.msra.mxu0 %v435
    %1388 = vmatprep.subr.mxu0 %v432
    %1389 = vmatpush1.msra.mxu0 %v431
    %1390 = vmatprep.subr.mxu0 %v428
    %1391 = vmatpush1.msra.mxu0 %v427
    %1392 = vmatprep.subr.mxu0 %v424
    %1393 = vmatpush1.msra.mxu0 %v423
    %1394 = vmatprep.subr.mxu0 0.0
    %1395 = vmatpush2.msra.mxu0 0.0
    %1396 = vmatprep.subr.mxu0 0.0
    %1397 = vmatpush2.msra.mxu0 0.0
    %1398 = vmatprep.subr.mxu0 0.0
    %1399 = vmatpush2.msra.mxu0 0.0
    %1400 = vmatprep.subr.mxu0 0.0
    %1401 = vmatpush2.msra.mxu0 0.0
    %1402 = vmatprep.subr.mxu0 0.0
    %1403 = vmatpush2.msra.mxu0 0.0
    %1404 = vmatprep.subr.mxu0 0.0
    %1405 = vmatpush2.msra.mxu0 0.0
    %1406 = vmatprep.subr.mxu0 0.0
    %1407 = vmatpush2.msra.mxu0 0.0
    %1408 = vmatprep.subr.mxu0 0.0
    %1409 = vmatpush2.msra.mxu0 0.0
    %1410 = vmatprep.subr.mxu0 0.0
    %1411 = vmatpush2.msra.mxu0 0.0
    %1412 = vmatprep.subr.mxu0 0.0
    %1413 = vmatpush2.msra.mxu0 0.0
    %1414 = vmatprep.subr.mxu0 0.0
    %1415 = vmatpush2.msra.mxu0 0.0
    %1416 = vmatprep.subr.mxu0 0.0
    %1417 = vmatpush2.msra.mxu0 0.0
    %1418 = vmatprep.subr.mxu0 0.0
    %1419 = vmatpush2.msra.mxu0 0.0
    %1420 = vmatprep.subr.mxu0 0.0
    %1421 = vmatpush2.msra.mxu0 0.0
    %1422 = vmatprep.subr.mxu0 0.0
    %1423 = vmatpush2.msra.mxu0 0.0
    %1424 = vmatprep.subr.mxu0 0.0
    %1425 = vmatpush2.msra.mxu0 0.0
    %1426 = vmatprep.mubr.f32.mxu0 0.0
    %1427 = vmatmul.mubr.f32.gmra.mxu0 %v1356
    %v1428 = vpop.f32.mrf.mxu0
    %v1429 = vadd.f32 0.0, %v1428
    %v1430 = vpop.f32.mrf.mxu0
    %v1431 = vadd.f32 0.0, %v1430
    %1432 = vdwg.mxu0
    %1433 = vmatprep.subr.mxu0 %v486
    %1434 = vmatpush1.msra.mxu0 %v485
    %1435 = vmatprep.subr.mxu0 %v482
    %1436 = vmatpush1.msra.mxu0 %v481
    %1437 = vmatprep.subr.mxu0 %v478
    %1438 = vmatpush1.msra.mxu0 %v477
    %1439 = vmatprep.subr.mxu0 %v474
    %1440 = vmatpush1.msra.mxu0 %v473
    %1441 = vmatprep.subr.mxu0 %v470
    %1442 = vmatpush1.msra.mxu0 %v469
    %1443 = vmatprep.subr.mxu0 %v466
    %1444 = vmatpush1.msra.mxu0 %v465
    %1445 = vmatprep.subr.mxu0 %v462
    %1446 = vmatpush1.msra.mxu0 %v461
    %1447 = vmatprep.subr.mxu0 %v458
    %1448 = vmatpush1.msra.mxu0 %v457
    %1449 = vmatprep.subr.mxu0 %v454
    %1450 = vmatpush1.msra.mxu0 %v453
    %1451 = vmatprep.subr.mxu0 %v450
    %1452 = vmatpush1.msra.mxu0 %v449
    %1453 = vmatprep.subr.mxu0 %v446
    %1454 = vmatpush1.msra.mxu0 %v445
    %1455 = vmatprep.subr.mxu0 %v442
    %1456 = vmatpush1.msra.mxu0 %v441
    %1457 = vmatprep.subr.mxu0 %v438
    %1458 = vmatpush1.msra.mxu0 %v437
    %1459 = vmatprep.subr.mxu0 %v434
    %1460 = vmatpush1.msra.mxu0 %v433
    %1461 = vmatprep.subr.mxu0 %v430
    %1462 = vmatpush1.msra.mxu0 %v429
    %1463 = vmatprep.subr.mxu0 %v426
    %1464 = vmatpush1.msra.mxu0 %v425
    %1465 = vmatprep.subr.mxu0 0.0
    %1466 = vmatpush2.msra.mxu0 0.0
    %1467 = vmatprep.subr.mxu0 0.0
    %1468 = vmatpush2.msra.mxu0 0.0
    %1469 = vmatprep.subr.mxu0 0.0
    %1470 = vmatpush2.msra.mxu0 0.0
    %1471 = vmatprep.subr.mxu0 0.0
    %1472 = vmatpush2.msra.mxu0 0.0
    %1473 = vmatprep.subr.mxu0 0.0
    %1474 = vmatpush2.msra.mxu0 0.0
    %1475 = vmatprep.subr.mxu0 0.0
    %1476 = vmatpush2.msra.mxu0 0.0
    %1477 = vmatprep.subr.mxu0 0.0
    %1478 = vmatpush2.msra.mxu0 0.0
    %1479 = vmatprep.subr.mxu0 0.0
    %1480 = vmatpush2.msra.mxu0 0.0
    %1481 = vmatprep.subr.mxu0 0.0
    %1482 = vmatpush2.msra.mxu0 0.0
    %1483 = vmatprep.subr.mxu0 0.0
    %1484 = vmatpush2.msra.mxu0 0.0
    %1485 = vmatprep.subr.mxu0 0.0
    %1486 = vmatpush2.msra.mxu0 0.0
    %1487 = vmatprep.subr.mxu0 0.0
    %1488 = vmatpush2.msra.mxu0 0.0
    %1489 = vmatprep.subr.mxu0 0.0
    %1490 = vmatpush2.msra.mxu0 0.0
    %1491 = vmatprep.subr.mxu0 0.0
    %1492 = vmatpush2.msra.mxu0 0.0
    %1493 = vmatprep.subr.mxu0 0.0
    %1494 = vmatpush2.msra.mxu0 0.0
    %1495 = vmatprep.subr.mxu0 0.0
    %1496 = vmatpush2.msra.mxu0 0.0
    %1497 = vmatprep.mubr.f32.mxu0 0.0
    %1498 = vmatmul.mubr.f32.gmra.mxu0 %v1356
    %v1499 = vpop.f32.mrf.mxu0
    %v1500 = vadd.f32 0.0, %v1499
    %v1501 = vpop.f32.mrf.mxu0
    %v1502 = vadd.f32 0.0, %v1501
    %1503 = vdwg.mxu0
    %v1504 = vadd.f32 %v1358, %v1429
    %v1505 = vadd.f32 %v1359, %v1431
    %v1506 = vadd.f32 %v1360, %v1500
    %v1507 = vadd.f32 %v1361, %v1502
    %v1508 = vxor.u32 %v1504, 2147483648
    %v1509 = vxor.u32 %v1505, 2147483648
    %v1510 = vmul.f32 %v1508, 1.442695
    %v1511 = vpow.pop %v1510
    %v1512 = vmul.f32 %v1509, 1.442695
    %v1513 = vpow.pop %v1512
    %v1514 = vadd.f32 %v1511, 1.0
    %v1515 = vadd.f32 %v1513, 1.0
    %v1516 = vrcp.pop %v1514
    %v1517 = vmul.f32 1.0, %v1516
    %v1518 = vrcp.pop %v1515
    %v1519 = vmul.f32 1.0, %v1518
    %v1520 = vtanh.pop %v1506
    %v1521 = vxor.u32 %v1507, 2147483648
    %v1522 = vmul.f32 %v1521, 1.442695
    %v1523 = vpow.pop %v1522
    %v1524 = vadd.f32 %v1523, 1.0
    %v1525 = vrcp.pop %v1524
    %v1526 = vmul.f32 1.0, %v1525
    %v1527 = vmul.f32 %v1519, %v1354
    %v1528 = vmul.f32 %v1517, %v1520
    %v1529 = vadd.f32 %v1527, %v1528
    %v1530 = vtanh.pop %v1529
    %v1531 = vmul.f32 %v1526, %v1530
    %s1532 = scalar_lea.vmem [#allocation2], 192
    %v1533 = vld [vmem:[%s1532] sm:$0xff]
    %v1534 = vld [vmem:[%s1532 + $0x8] sm:$0xff]
    %v1535 = vld [vmem:[%s1532 + $0x10] sm:$0xff]
    %v1536 = vld [vmem:[%s1532 + $0x18] sm:$0xff]
    %1537 = vmatprep.subr.mxu0 %v484
    %1538 = vmatpush1.msra.mxu0 %v483
    %1539 = vmatprep.subr.mxu0 %v480
    %1540 = vmatpush1.msra.mxu0 %v479
    %1541 = vmatprep.subr.mxu0 %v476
    %1542 = vmatpush1.msra.mxu0 %v475
    %1543 = vmatprep.subr.mxu0 %v472
    %1544 = vmatpush1.msra.mxu0 %v471
    %1545 = vmatprep.subr.mxu0 %v468
    %1546 = vmatpush1.msra.mxu0 %v467
    %1547 = vmatprep.subr.mxu0 %v464
    %1548 = vmatpush1.msra.mxu0 %v463
    %1549 = vmatprep.subr.mxu0 %v460
    %1550 = vmatpush1.msra.mxu0 %v459
    %1551 = vmatprep.subr.mxu0 %v456
    %1552 = vmatpush1.msra.mxu0 %v455
    %1553 = vmatprep.subr.mxu0 %v452
    %1554 = vmatpush1.msra.mxu0 %v451
    %1555 = vmatprep.subr.mxu0 %v448
    %1556 = vmatpush1.msra.mxu0 %v447
    %1557 = vmatprep.subr.mxu0 %v444
    %1558 = vmatpush1.msra.mxu0 %v443
    %1559 = vmatprep.subr.mxu0 %v440
    %1560 = vmatpush1.msra.mxu0 %v439
    %1561 = vmatprep.subr.mxu0 %v436
    %1562 = vmatpush1.msra.mxu0 %v435
    %1563 = vmatprep.subr.mxu0 %v432
    %1564 = vmatpush1.msra.mxu0 %v431
    %1565 = vmatprep.subr.mxu0 %v428
    %1566 = vmatpush1.msra.mxu0 %v427
    %1567 = vmatprep.subr.mxu0 %v424
    %1568 = vmatpush1.msra.mxu0 %v423
    %1569 = vmatprep.subr.mxu0 0.0
    %1570 = vmatpush2.msra.mxu0 0.0
    %1571 = vmatprep.subr.mxu0 0.0
    %1572 = vmatpush2.msra.mxu0 0.0
    %1573 = vmatprep.subr.mxu0 0.0
    %1574 = vmatpush2.msra.mxu0 0.0
    %1575 = vmatprep.subr.mxu0 0.0
    %1576 = vmatpush2.msra.mxu0 0.0
    %1577 = vmatprep.subr.mxu0 0.0
    %1578 = vmatpush2.msra.mxu0 0.0
    %1579 = vmatprep.subr.mxu0 0.0
    %1580 = vmatpush2.msra.mxu0 0.0
    %1581 = vmatprep.subr.mxu0 0.0
    %1582 = vmatpush2.msra.mxu0 0.0
    %1583 = vmatprep.subr.mxu0 0.0
    %1584 = vmatpush2.msra.mxu0 0.0
    %1585 = vmatprep.subr.mxu0 0.0
    %1586 = vmatpush2.msra.mxu0 0.0
    %1587 = vmatprep.subr.mxu0 0.0
    %1588 = vmatpush2.msra.mxu0 0.0
    %1589 = vmatprep.subr.mxu0 0.0
    %1590 = vmatpush2.msra.mxu0 0.0
    %1591 = vmatprep.subr.mxu0 0.0
    %1592 = vmatpush2.msra.mxu0 0.0
    %1593 = vmatprep.subr.mxu0 0.0
    %1594 = vmatpush2.msra.mxu0 0.0
    %1595 = vmatprep.subr.mxu0 0.0
    %1596 = vmatpush2.msra.mxu0 0.0
    %1597 = vmatprep.subr.mxu0 0.0
    %1598 = vmatpush2.msra.mxu0 0.0
    %1599 = vmatprep.subr.mxu0 0.0
    %1600 = vmatpush2.msra.mxu0 0.0
    %1601 = vmatprep.mubr.f32.mxu0 0.0
    %1602 = vmatmul.mubr.f32.gmra.mxu0 %v1531
    %v1603 = vpop.f32.mrf.mxu0
    %v1604 = vadd.f32 0.0, %v1603
    %v1605 = vpop.f32.mrf.mxu0
    %v1606 = vadd.f32 0.0, %v1605
    %1607 = vdwg.mxu0
    %1608 = vmatprep.subr.mxu0 %v486
    %1609 = vmatpush1.msra.mxu0 %v485
    %1610 = vmatprep.subr.mxu0 %v482
    %1611 = vmatpush1.msra.mxu0 %v481
    %1612 = vmatprep.subr.mxu0 %v478
    %1613 = vmatpush1.msra.mxu0 %v477
    %1614 = vmatprep.subr.mxu0 %v474
    %1615 = vmatpush1.msra.mxu0 %v473
    %1616 = vmatprep.subr.mxu0 %v470
    %1617 = vmatpush1.msra.mxu0 %v469
    %1618 = vmatprep.subr.mxu0 %v466
    %1619 = vmatpush1.msra.mxu0 %v465
    %1620 = vmatprep.subr.mxu0 %v462
    %1621 = vmatpush1.msra.mxu0 %v461
    %1622 = vmatprep.subr.mxu0 %v458
    %1623 = vmatpush1.msra.mxu0 %v457
    %1624 = vmatprep.subr.mxu0 %v454
    %1625 = vmatpush1.msra.mxu0 %v453
    %1626 = vmatprep.subr.mxu0 %v450
    %1627 = vmatpush1.msra.mxu0 %v449
    %1628 = vmatprep.subr.mxu0 %v446
    %1629 = vmatpush1.msra.mxu0 %v445
    %1630 = vmatprep.subr.mxu0 %v442
    %1631 = vmatpush1.msra.mxu0 %v441
    %1632 = vmatprep.subr.mxu0 %v438
    %1633 = vmatpush1.msra.mxu0 %v437
    %1634 = vmatprep.subr.mxu0 %v434
    %1635 = vmatpush1.msra.mxu0 %v433
    %1636 = vmatprep.subr.mxu0 %v430
    %1637 = vmatpush1.msra.mxu0 %v429
    %1638 = vmatprep.subr.mxu0 %v426
    %1639 = vmatpush1.msra.mxu0 %v425
    %1640 = vmatprep.subr.mxu0 0.0
    %1641 = vmatpush2.msra.mxu0 0.0
    %1642 = vmatprep.subr.mxu0 0.0
    %1643 = vmatpush2.msra.mxu0 0.0
    %1644 = vmatprep.subr.mxu0 0.0
    %1645 = vmatpush2.msra.mxu0 0.0
    %1646 = vmatprep.subr.mxu0 0.0
    %1647 = vmatpush2.msra.mxu0 0.0
    %1648 = vmatprep.subr.mxu0 0.0
    %1649 = vmatpush2.msra.mxu0 0.0
    %1650 = vmatprep.subr.mxu0 0.0
    %1651 = vmatpush2.msra.mxu0 0.0
    %1652 = vmatprep.subr.mxu0 0.0
    %1653 = vmatpush2.msra.mxu0 0.0
    %1654 = vmatprep.subr.mxu0 0.0
    %1655 = vmatpush2.msra.mxu0 0.0
    %1656 = vmatprep.subr.mxu0 0.0
    %1657 = vmatpush2.msra.mxu0 0.0
    %1658 = vmatprep.subr.mxu0 0.0
    %1659 = vmatpush2.msra.mxu0 0.0
    %1660 = vmatprep.subr.mxu0 0.0
    %1661 = vmatpush2.msra.mxu0 0.0
    %1662 = vmatprep.subr.mxu0 0.0
    %1663 = vmatpush2.msra.mxu0 0.0
    %1664 = vmatprep.subr.mxu0 0.0
    %1665 = vmatpush2.msra.mxu0 0.0
    %1666 = vmatprep.subr.mxu0 0.0
    %1667 = vmatpush2.msra.mxu0 0.0
    %1668 = vmatprep.subr.mxu0 0.0
    %1669 = vmatpush2.msra.mxu0 0.0
    %1670 = vmatprep.subr.mxu0 0.0
    %1671 = vmatpush2.msra.mxu0 0.0
    %1672 = vmatprep.mubr.f32.mxu0 0.0
    %1673 = vmatmul.mubr.f32.gmra.mxu0 %v1531
    %v1674 = vpop.f32.mrf.mxu0
    %v1675 = vadd.f32 0.0, %v1674
    %v1676 = vpop.f32.mrf.mxu0
    %v1677 = vadd.f32 0.0, %v1676
    %1678 = vdwg.mxu0
    %v1679 = vadd.f32 %v1533, %v1604
    %v1680 = vadd.f32 %v1534, %v1606
    %v1681 = vadd.f32 %v1535, %v1675
    %v1682 = vadd.f32 %v1536, %v1677
    %v1683 = vxor.u32 %v1679, 2147483648
    %v1684 = vxor.u32 %v1680, 2147483648
    %v1685 = vmul.f32 %v1683, 1.442695
    %v1686 = vpow.pop %v1685
    %v1687 = vmul.f32 %v1684, 1.442695
    %v1688 = vpow.pop %v1687
    %v1689 = vadd.f32 %v1686, 1.0
    %v1690 = vadd.f32 %v1688, 1.0
    %v1691 = vrcp.pop %v1689
    %v1692 = vmul.f32 1.0, %v1691
    %v1693 = vrcp.pop %v1690
    %v1694 = vmul.f32 1.0, %v1693
    %v1695 = vtanh.pop %v1681
    %v1696 = vxor.u32 %v1682, 2147483648
    %v1697 = vmul.f32 %v1696, 1.442695
    %v1698 = vpow.pop %v1697
    %v1699 = vadd.f32 %v1698, 1.0
    %v1700 = vrcp.pop %v1699
    %v1701 = vmul.f32 1.0, %v1700
    %v1702 = vmul.f32 %v1694, %v1529
    %v1703 = vmul.f32 %v1692, %v1695
    %v1704 = vadd.f32 %v1702, %v1703
    %v1705 = vtanh.pop %v1704
    %v1706 = vmul.f32 %v1701, %v1705
    %s1707 = scalar_lea.vmem [#allocation2], 224
    %v1708 = vld [vmem:[%s1707] sm:$0xff]
    %v1709 = vld [vmem:[%s1707 + $0x8] sm:$0xff]
    %v1710 = vld [vmem:[%s1707 + $0x10] sm:$0xff]
    %v1711 = vld [vmem:[%s1707 + $0x18] sm:$0xff]
    %1712 = vmatprep.subr.mxu0 %v484
    %1713 = vmatpush1.msra.mxu0 %v483
    %1714 = vmatprep.subr.mxu0 %v480
    %1715 = vmatpush1.msra.mxu0 %v479
    %1716 = vmatprep.subr.mxu0 %v476
    %1717 = vmatpush1.msra.mxu0 %v475
    %1718 = vmatprep.subr.mxu0 %v472
    %1719 = vmatpush1.msra.mxu0 %v471
    %1720 = vmatprep.subr.mxu0 %v468
    %1721 = vmatpush1.msra.mxu0 %v467
    %1722 = vmatprep.subr.mxu0 %v464
    %1723 = vmatpush1.msra.mxu0 %v463
    %1724 = vmatprep.subr.mxu0 %v460
    %1725 = vmatpush1.msra.mxu0 %v459
    %1726 = vmatprep.subr.mxu0 %v456
    %1727 = vmatpush1.msra.mxu0 %v455
    %1728 = vmatprep.subr.mxu0 %v452
    %1729 = vmatpush1.msra.mxu0 %v451
    %1730 = vmatprep.subr.mxu0 %v448
    %1731 = vmatpush1.msra.mxu0 %v447
    %1732 = vmatprep.subr.mxu0 %v444
    %1733 = vmatpush1.msra.mxu0 %v443
    %1734 = vmatprep.subr.mxu0 %v440
    %1735 = vmatpush1.msra.mxu0 %v439
    %1736 = vmatprep.subr.mxu0 %v436
    %1737 = vmatpush1.msra.mxu0 %v435
    %1738 = vmatprep.subr.mxu0 %v432
    %1739 = vmatpush1.msra.mxu0 %v431
    %1740 = vmatprep.subr.mxu0 %v428
    %1741 = vmatpush1.msra.mxu0 %v427
    %1742 = vmatprep.subr.mxu0 %v424
    %1743 = vmatpush1.msra.mxu0 %v423
    %1744 = vmatprep.subr.mxu0 0.0
    %1745 = vmatpush2.msra.mxu0 0.0
    %1746 = vmatprep.subr.mxu0 0.0
    %1747 = vmatpush2.msra.mxu0 0.0
    %1748 = vmatprep.subr.mxu0 0.0
    %1749 = vmatpush2.msra.mxu0 0.0
    %1750 = vmatprep.subr.mxu0 0.0
    %1751 = vmatpush2.msra.mxu0 0.0
    %1752 = vmatprep.subr.mxu0 0.0
    %1753 = vmatpush2.msra.mxu0 0.0
    %1754 = vmatprep.subr.mxu0 0.0
    %1755 = vmatpush2.msra.mxu0 0.0
    %1756 = vmatprep.subr.mxu0 0.0
    %1757 = vmatpush2.msra.mxu0 0.0
    %1758 = vmatprep.subr.mxu0 0.0
    %1759 = vmatpush2.msra.mxu0 0.0
    %1760 = vmatprep.subr.mxu0 0.0
    %1761 = vmatpush2.msra.mxu0 0.0
    %1762 = vmatprep.subr.mxu0 0.0
    %1763 = vmatpush2.msra.mxu0 0.0
    %1764 = vmatprep.subr.mxu0 0.0
    %1765 = vmatpush2.msra.mxu0 0.0
    %1766 = vmatprep.subr.mxu0 0.0
    %1767 = vmatpush2.msra.mxu0 0.0
    %1768 = vmatprep.subr.mxu0 0.0
    %1769 = vmatpush2.msra.mxu0 0.0
    %1770 = vmatprep.subr.mxu0 0.0
    %1771 = vmatpush2.msra.mxu0 0.0
    %1772 = vmatprep.subr.mxu0 0.0
    %1773 = vmatpush2.msra.mxu0 0.0
    %1774 = vmatprep.subr.mxu0 0.0
    %1775 = vmatpush2.msra.mxu0 0.0
    %1776 = vmatprep.mubr.f32.mxu0 0.0
    %1777 = vmatmul.mubr.f32.gmra.mxu0 %v1706
    %v1778 = vpop.f32.mrf.mxu0
    %v1779 = vadd.f32 0.0, %v1778
    %v1780 = vpop.f32.mrf.mxu0
    %v1781 = vadd.f32 0.0, %v1780
    %1782 = vdwg.mxu0
    %1783 = vmatprep.subr.mxu0 %v486
    %1784 = vmatpush1.msra.mxu0 %v485
    %1785 = vmatprep.subr.mxu0 %v482
    %1786 = vmatpush1.msra.mxu0 %v481
    %1787 = vmatprep.subr.mxu0 %v478
    %1788 = vmatpush1.msra.mxu0 %v477
    %1789 = vmatprep.subr.mxu0 %v474
    %1790 = vmatpush1.msra.mxu0 %v473
    %1791 = vmatprep.subr.mxu0 %v470
    %1792 = vmatpush1.msra.mxu0 %v469
    %1793 = vmatprep.subr.mxu0 %v466
    %1794 = vmatpush1.msra.mxu0 %v465
    %1795 = vmatprep.subr.mxu0 %v462
    %1796 = vmatpush1.msra.mxu0 %v461
    %1797 = vmatprep.subr.mxu0 %v458
    %1798 = vmatpush1.msra.mxu0 %v457
    %1799 = vmatprep.subr.mxu0 %v454
    %1800 = vmatpush1.msra.mxu0 %v453
    %1801 = vmatprep.subr.mxu0 %v450
    %1802 = vmatpush1.msra.mxu0 %v449
    %1803 = vmatprep.subr.mxu0 %v446
    %1804 = vmatpush1.msra.mxu0 %v445
    %1805 = vmatprep.subr.mxu0 %v442
    %1806 = vmatpush1.msra.mxu0 %v441
    %1807 = vmatprep.subr.mxu0 %v438
    %1808 = vmatpush1.msra.mxu0 %v437
    %1809 = vmatprep.subr.mxu0 %v434
    %1810 = vmatpush1.msra.mxu0 %v433
    %1811 = vmatprep.subr.mxu0 %v430
    %1812 = vmatpush1.msra.mxu0 %v429
    %1813 = vmatprep.subr.mxu0 %v426
    %1814 = vmatpush1.msra.mxu0 %v425
    %1815 = vmatprep.subr.mxu0 0.0
    %1816 = vmatpush2.msra.mxu0 0.0
    %1817 = vmatprep.subr.mxu0 0.0
    %1818 = vmatpush2.msra.mxu0 0.0
    %1819 = vmatprep.subr.mxu0 0.0
    %1820 = vmatpush2.msra.mxu0 0.0
    %1821 = vmatprep.subr.mxu0 0.0
    %1822 = vmatpush2.msra.mxu0 0.0
    %1823 = vmatprep.subr.mxu0 0.0
    %1824 = vmatpush2.msra.mxu0 0.0
    %1825 = vmatprep.subr.mxu0 0.0
    %1826 = vmatpush2.msra.mxu0 0.0
    %1827 = vmatprep.subr.mxu0 0.0
    %1828 = vmatpush2.msra.mxu0 0.0
    %1829 = vmatprep.subr.mxu0 0.0
    %1830 = vmatpush2.msra.mxu0 0.0
    %1831 = vmatprep.subr.mxu0 0.0
    %1832 = vmatpush2.msra.mxu0 0.0
    %1833 = vmatprep.subr.mxu0 0.0
    %1834 = vmatpush2.msra.mxu0 0.0
    %1835 = vmatprep.subr.mxu0 0.0
    %1836 = vmatpush2.msra.mxu0 0.0
    %1837 = vmatprep.subr.mxu0 0.0
    %1838 = vmatpush2.msra.mxu0 0.0
    %1839 = vmatprep.subr.mxu0 0.0
    %1840 = vmatpush2.msra.mxu0 0.0
    %1841 = vmatprep.subr.mxu0 0.0
    %1842 = vmatpush2.msra.mxu0 0.0
    %1843 = vmatprep.subr.mxu0 0.0
    %1844 = vmatpush2.msra.mxu0 0.0
    %1845 = vmatprep.subr.mxu0 0.0
    %1846 = vmatpush2.msra.mxu0 0.0
    %1847 = vmatprep.mubr.f32.mxu0 0.0
    %1848 = vmatmul.mubr.f32.gmra.mxu0 %v1706
    %v1849 = vpop.f32.mrf.mxu0
    %v1850 = vadd.f32 0.0, %v1849
    %v1851 = vpop.f32.mrf.mxu0
    %v1852 = vadd.f32 0.0, %v1851
    %1853 = vdwg.mxu0
    %v1854 = vadd.f32 %v1708, %v1779
    %v1855 = vadd.f32 %v1709, %v1781
    %v1856 = vadd.f32 %v1710, %v1850
    %v1857 = vadd.f32 %v1711, %v1852
    %v1858 = vxor.u32 %v1854, 2147483648
    %v1859 = vxor.u32 %v1855, 2147483648
    %v1860 = vmul.f32 %v1858, 1.442695
    %v1861 = vpow.pop %v1860
    %v1862 = vmul.f32 %v1859, 1.442695
    %v1863 = vpow.pop %v1862
    %v1864 = vadd.f32 %v1861, 1.0
    %v1865 = vadd.f32 %v1863, 1.0
    %v1866 = vrcp.pop %v1864
    %v1867 = vmul.f32 1.0, %v1866
    %v1868 = vrcp.pop %v1865
    %v1869 = vmul.f32 1.0, %v1868
    %v1870 = vtanh.pop %v1856
    %v1871 = vxor.u32 %v1857, 2147483648
    %v1872 = vmul.f32 %v1871, 1.442695
    %v1873 = vpow.pop %v1872
    %v1874 = vadd.f32 %v1873, 1.0
    %v1875 = vrcp.pop %v1874
    %v1876 = vmul.f32 1.0, %v1875
    %v1877 = vmul.f32 %v1869, %v1704
    %v1878 = vmul.f32 %v1867, %v1870
    %v1879 = vadd.f32 %v1877, %v1878
    %v1880 = vtanh.pop %v1879
    %v1881 = vmul.f32 %v1876, %v1880
    %1882 = vst [vmem:[#allocation3] sm:$0xff] %v1881
    %1883 = vst [vmem:[#allocation4] sm:$0xff] %v1879
    %1884 = vst [vmem:[#allocation11] sm:$0xff] %v1881
    // Predicated region
    $region34: #{tpu_custom_call.1} parent=1 // pred_check
      _
    $region35: #{tpu_custom_call.1} parent=1 // pred_check_branch
      %1886 = sbr.rel (0) target = $region37
    $region36: #{tpu_custom_call.1} parent=1 // pred_region
      %s1888 = ssub.s32 128, 128
      %1889 = vsyncadd [#allocation7], %s1888
      %s1891 = sshll.u32 [#allocation11], 4
      %s1892 = int_to_ptr.vmem [resolvable:$true] %s1891
      %1894 = dma.vmem_to_hbm [thread:$0]  %s1892, 128, %s4, [#allocation7]
    $region37: #{tpu_custom_call.1} parent=1 // pred_fallthru
      _
    // Predicated region
    $region38: #{tpu_custom_call.1} parent=1 // pred_check
      _
    $region39: #{tpu_custom_call.1} parent=1 // pred_check_branch
      %1896 = sbr.rel (0) target = $region41
    $region40: #{tpu_custom_call.1} parent=1 // pred_region
      %1897 = dma.done [#allocation7], 128
    $region41: #{tpu_custom_call.1} parent=1 // pred_fallthru
      _
    %1898 = vsyncpa [#allocation6], 1
    %1899 = vsyncpa [#allocation9], 1
    %1900 = vsyncpa [#allocation7], 1

</llo_original>
